<compile_context>
chip_gen: v6e
topology: v6e:2x2x1
jax: 0.10.0
libtpu: 0.0.40
codegen_flags: <defaults>
</compile_context>

<pallas_src>
import functools

import numpy as np
import jax
import jax.numpy as jnp
from jax.experimental import pallas as pl
from jax.experimental.pallas import tpu as pltpu

F32 = jnp.float32
BF16 = jnp.bfloat16
_VMEM_LIMIT = 48 * 1024 * 1024


# ----------------------------------------------------------------------------
# Kernel 1: one MGNN_ISLayer pass per grid step (inner -> l=0, outer -> l=1)
# ----------------------------------------------------------------------------
def _layer_kernel(x_ref, bones_ref,
                  src_oh_ref, dst_oh_ref, same_g_ref, tri_g_ref,
                  k_edge_ref, inv_deg_ref,
                  p_w1_ref, p_b1_ref, p_w2_ref, p_b2_ref,
                  lin1_w_ref, lin1_b_ref, att_ref,
                  wa_w_ref, wa_b_ref, bias_ref, lt_w_ref, lt_b_ref,
                  msg_ref, *, apply_topk):
    x = x_ref[...]                                   # (N, D) f32
    # 0/1 structure matrices stream in as bf16 (half the DMA / VMEM bytes);
    # all math stays f32 for parity with the PyTorch reference.
    src_oh = src_oh_ref[0].astype(F32)               # (E, N)
    dst_oh = dst_oh_ref[0].astype(F32)               # (E, N)
    n_edges = src_oh.shape[0]

    # endpoint gathers as one-hot MXU matmuls (stay in VMEM)
    x_i = jnp.dot(dst_oh, x, preferred_element_type=F32)         # (E, D)
    x_j = jnp.dot(src_oh, x, preferred_element_type=F32)         # (E, D)
    e = x_i * x_j

    # p_ij = sigmoid(p_lin2(relu(p_lin1(e)) + p_bias1) + p_bias2)
    # (p_bias1 @ W2 + b2 + p_bias2 folded host-side into p_b2)
    h1 = jnp.maximum(
        jnp.dot(e, p_w1_ref[0], preferred_element_type=F32) + p_b1_ref[0], 0.0)
    p = jax.nn.sigmoid(
        jnp.dot(h1, p_w2_ref[0], preferred_element_type=F32) + p_b2_ref[0])  # (E,1)

    temp = jnp.maximum(
        jnp.dot(e, lin1_w_ref[0], preferred_element_type=F32) + lin1_b_ref[0],
        0.0)                                                      # (E, H*D)
    c = jax.nn.leaky_relu(att_ref[0] * temp, negative_slope=0.01)
    wa = (jnp.dot(e, wa_w_ref[0], preferred_element_type=F32)
          + wa_b_ref[0])                                          # (E, H*D)

    if apply_topk:
        # per-graph top-k gating of p_ij, fully in VMEM.
        # rank[a] = #{b in same graph : p[b] > p[a] or (p[b]==p[a] and b < a)}
        # same_g (zero diagonal) and tri_g (= same graph & col<row) are
        # host-precomputed bf16 masks; the row reduction runs on the MXU.
        same_g = same_g_ref[0].astype(F32)           # (E, E)
        tri_g = tri_g_ref[0].astype(F32)             # (E, E)
        # p moved to lane layout via a tiny K=1 matmul (bit-exact 1.0*p copy).
        p_lane = jax.lax.dot_general(
            jnp.ones((1, 1), F32), p, (((1,), (1,)), ((), ())),
            preferred_element_type=F32)              # (1, E)
        cmp = (same_g * (p_lane > p).astype(F32)
               + tri_g * (p_lane == p).astype(F32))  # (E, E)
        rank = jnp.dot(cmp, jnp.ones((n_edges, 1), F32),
                       preferred_element_type=F32)   # (E, 1)
        p = p * (rank < k_edge_ref[0]).astype(F32)

    # segment softmax over edges sharing a target node, scatter-then-gather:
    # gsum = dst_oh @ (dst_oh^T @ exp(c)) -- no (E, E) intermediate.  softmax
    # is shift-invariant per group, so one per-column max stabilizes all
    # groups at once (values are bounded, no underflow at this scale).
    m = jnp.max(c, axis=0, keepdims=True)
    ex = jnp.exp(c - m)
    node_sum = jax.lax.dot_general(dst_oh, ex, (((0,), (0,)), ((), ())),
                                   preferred_element_type=F32)    # (N, H*D)
    gsum = jnp.dot(dst_oh, node_sum, preferred_element_type=F32)  # (E, H*D)
    soft = ex / (gsum + 1e-16)

    # alpha = softmax(c).sum over dim inside each head, broadcast back per
    # head: a single precomputed block-ones matmul.
    alpha_b = jnp.dot(soft, bones_ref[...].astype(F32),
                      preferred_element_type=F32)                 # (E, H*D)
    eo = jax.nn.sigmoid(wa * alpha_b * p)

    # mean aggregation onto target nodes (+ update bias), then lin_t
    node_agg = jax.lax.dot_general(dst_oh, eo, (((0,), (0,)), ((), ())),
                                   preferred_element_type=F32)    # (N, H*D)
    upd = node_agg * inv_deg_ref[0] + bias_ref[0]
    msg_ref[0] = (jnp.dot(upd, lt_w_ref[0], preferred_element_type=F32)
                  + lt_b_ref[0])                                  # (N, D)


# ----------------------------------------------------------------------------
# Kernel 2: 3-step GRU + split-batch mean-pool readout
# ----------------------------------------------------------------------------
def _gru_readout_kernel(x_ref, msg_ref, h0_ref,
                        w_ih_ref, w_hh_ref, b_ih_ref, b_hh_ref,
                        pool_item_ref, pool_user_ref,
                        inv_item_ref, inv_user_ref,
                        batch_oh_ref, node_w_ref, y_ref, *, dim):
    d = dim
    x = x_ref[...]                                   # (N, D)
    n_nodes = x.shape[0]
    inner_m = msg_ref[0]                             # (N, D)
    outer_m = msg_ref[1]                             # (N, D)

    # GRU over [node_emb, inner_m, outer_m]; input-side projections for all
    # three steps fused into one (3N,D)@(D,3D) matmul; one h-side (N,D)@(D,3D)
    # matmul per step, gates lane-sliced in-vreg.  Gate order [r, z, n].
    xs = jnp.concatenate([x, inner_m, outer_m], axis=0)           # (3N, D)
    gi_all = (jnp.dot(xs, w_ih_ref[...], preferred_element_type=F32)
              + b_ih_ref[...])                                    # (3N, 3D)
    w_hh = w_hh_ref[...]
    b_hh = b_hh_ref[...]
    h = h0_ref[...]
    for t in range(3):                               # static unroll, seq == 3
        gi = gi_all[t * n_nodes:(t + 1) * n_nodes, :]
        gh = jnp.dot(h, w_hh, preferred_element_type=F32) + b_hh
        r = jax.nn.sigmoid(gi[:, :d] + gh[:, :d])
        z = jax.nn.sigmoid(gi[:, d:2 * d] + gh[:, d:2 * d])
        n = jnp.tanh(gi[:, 2 * d:] + r * gh[:, 2 * d:])
        h = (1.0 - z) * n + z * h

    # readout: split-batch mean pool (separate item / user pool matrices ->
    # no sublane slicing), user . item + summed node weights.
    item = (jnp.dot(pool_item_ref[...].astype(F32), h,
                    preferred_element_type=F32) * inv_item_ref[...])  # (B, D)
    user = (jnp.dot(pool_user_ref[...].astype(F32), h,
                    preferred_element_type=F32) * inv_user_ref[...])  # (B, D)
    sum_w = jnp.dot(batch_oh_ref[...].astype(F32), node_w_ref[...],
                    preferred_element_type=F32)                       # (B, 1)
    y = jax.nn.sigmoid(jnp.sum(user * item, axis=1, keepdims=True) + sum_w)
    # lane-dense output block; column 0 carries the prediction.
    y_ref[...] = jnp.broadcast_to(y, y_ref.shape)


# ----------------------------------------------------------------------------
# Host-side (numpy) graph-structure / parameter preparation
# ----------------------------------------------------------------------------
def outer_offset_np(batch, user_node_num, outer_edge_index):
    nodes_per_graph = np.bincount(batch)
    inter_per_graph = (nodes_per_graph - user_node_num) * user_node_num * 2
    cum_num = np.concatenate([[0], np.cumsum(nodes_per_graph)[:-1]])
    offset = np.repeat(cum_num, inter_per_graph)
    return outer_edge_index + offset[None, :]


def split_batch_np(batch, user_node_num):
    n = batch.shape[0]
    nodes_per_graph = np.bincount(batch)
    cum_num = np.concatenate([[0], np.cumsum(nodes_per_graph)[:-1]])
    multi_hot = np.concatenate(
        [cum_num + i for i in range(user_node_num)]).astype(np.int64)
    onehot_sum = np.zeros(n, dtype=np.int64)
    for idx in multi_hot:
        onehot_sum[idx] += 1
    test = onehot_sum * (int(batch.max()) + 1)
    return batch + test


def _prep_graph(edge_index, batch_np, n_nodes, topk_prop, e_max):
    src = np.asarray(edge_index[0], dtype=np.int64)
    dst = np.asarray(edge_index[1], dtype=np.int64)
    n_edges = src.shape[0]

    src_oh = np.zeros((e_max, n_nodes), np.float32)
    src_oh[np.arange(n_edges), src] = 1.0
    dst_oh = np.zeros((e_max, n_nodes), np.float32)
    dst_oh[np.arange(n_edges), dst] = 1.0

    edge_graph = batch_np[dst]
    n_graphs = int(batch_np.max()) + 1
    same = np.zeros((e_max, e_max), np.float32)
    same[:n_edges, :n_edges] = (
        edge_graph[:, None] == edge_graph[None, :]).astype(np.float32)
    rows = np.arange(e_max)[:, None]
    cols = np.arange(e_max)[None, :]
    tri = same * (cols < rows)            # same graph & strictly lower index
    same = same * (cols != rows)          # zero diagonal (self-compare unused)

    counts = np.bincount(edge_graph, minlength=n_graphs)
    # k = int(topk * edges_in_graph) -- truncation, same as the reference.
    k_per_graph = np.floor(topk_prop * counts).astype(np.float32)
    k_edge = np.zeros((e_max, 1), np.float32)
    k_edge[:n_edges, 0] = k_per_graph[edge_graph]

    deg = dst_oh.sum(axis=0)
    inv_deg = np.where(deg > 0, 1.0 / np.maximum(deg, 1.0),
                       0.0).reshape(n_nodes, 1).astype(np.float32)

    return dict(src_oh=jnp.asarray(src_oh, BF16),
                dst_oh=jnp.asarray(dst_oh, BF16),
                same_g=jnp.asarray(same, BF16),
                tri_g=jnp.asarray(tri, BF16),
                k_edge=jnp.asarray(k_edge, F32),
                inv_deg=jnp.asarray(inv_deg, F32))


def _pool_structure(batch_np, user_node_num):
    n = batch_np.shape[0]
    n_graphs = int(batch_np.max()) + 1
    new_batch = split_batch_np(batch_np, user_node_num)   # values in [0, 2B)
    pool = np.zeros((2 * n_graphs, n), np.float32)
    pool[new_batch, np.arange(n)] = 1.0
    cnt = pool.sum(axis=1, keepdims=True)
    inv_cnt = np.where(cnt > 0, 1.0 / np.maximum(cnt, 1.0),
                       0.0).astype(np.float32)
    batch_oh = np.zeros((n_graphs, n), np.float32)
    batch_oh[batch_np, np.arange(n)] = 1.0
    return (jnp.asarray(pool[:n_graphs], BF16),
            jnp.asarray(pool[n_graphs:], BF16),
            jnp.asarray(inv_cnt[:n_graphs], F32),
            jnp.asarray(inv_cnt[n_graphs:], F32),
            jnp.asarray(batch_oh, BF16))


def _head_block_ones(heads, dim):
    b = np.zeros((heads * dim, heads * dim), np.float32)
    for h in range(heads):
        b[h * dim:(h + 1) * dim, h * dim:(h + 1) * dim] = 1.0
    return b


def _prep_layer_params(lp, heads):
    # fold p_bias1 through p_lin2:  (relu(.)+b1p) @ W2 + b2 + b2p
    #   == relu(.) @ W2 + (b1p @ W2 + b2 + b2p)
    p_b2_eff = jnp.dot(lp['p_bias1'], lp['p_w2']) + lp['p_b2'] + lp['p_bias2']
    return dict(p_w1=lp['p_w1'], p_b1=lp['p_b1'],
                p_w2=lp['p_w2'], p_b2=p_b2_eff,
                lin1_w=lp['lin1_w'], lin1_b=lp['lin1_b'], att=lp['att'],
                wa_w=jnp.tile(lp['wa_w'], (1, heads)),
                wa_b=jnp.tile(lp['wa_b'], (1, heads)),
                bias=lp['bias'])


def _layer_operands(g, lp, lt_w, lt_b):
    return [g['src_oh'], g['dst_oh'], g['same_g'], g['tri_g'],
            g['k_edge'], g['inv_deg'],
            lp['p_w1'], lp['p_b1'], lp['p_w2'], lp['p_b2'],
            lp['lin1_w'], lp['lin1_b'], lp['att'],
            lp['wa_w'], lp['wa_b'], lp['bias'], lt_w, lt_b]


# ----------------------------------------------------------------------------
# Forward
# ----------------------------------------------------------------------------
def mgnn_is_forward(params, node_id, batch_np, inner_edge_index,
                    outer_edge_local, cfg, gru_h0):
    dim, heads, user_n = cfg['dim'], cfg['heads'], cfg['num_user_features']
    n_graphs = int(batch_np.max()) + 1
    n_nodes = batch_np.shape[0]

    # embedding lookups (tiny gathers, left as host-side JAX)
    node_w = params['node_weight'][node_id[:, 0]]            # (N, 1)
    node_emb = params['feature_embedding'][node_id[:, 0]]    # (N, dim)

    outer_edge_index = outer_offset_np(batch_np, user_n, outer_edge_local)
    e_max = max(inner_edge_index.shape[1], outer_edge_index.shape[1])

    g_inner = _prep_graph(inner_edge_index, batch_np, n_nodes,
                          cfg['topk'], e_max)
    g_outer = _prep_graph(outer_edge_index, batch_np, n_nodes,
                          cfg['topk'], e_max)
    (pool_item, pool_user, inv_item, inv_user,
     batch_oh) = _pool_structure(batch_np, user_n)
    block_ones = jnp.asarray(_head_block_ones(heads, dim), BF16)

    lp_inner = _prep_layer_params(params['inner'], heads)
    lp_outer = _prep_layer_params(params['outer'], heads)
    inner_ops = _layer_operands(g_inner, lp_inner,
                                params['lin_t1_w'], params['lin_t1_b'])
    outer_ops = _layer_operands(g_outer, lp_outer,
                                params['lin_t2_w'], params['lin_t2_b'])
    # stack per-layer operands along a leading dim of 2; the grid selects one
    # layer's slab per step.
    stacked = [jnp.stack([a, b]) for a, b in zip(inner_ops, outer_ops)]

    def _stacked_spec(arr):
        nd = arr.ndim
        return pl.BlockSpec((1,) + arr.shape[1:],
                            lambda l, _nd=nd: (l,) + (0,) * (_nd - 1))

    msgs = pl.pallas_call(
        functools.partial(_layer_kernel, apply_topk=cfg['layer'] > 0),
        out_shape=jax.ShapeDtypeStruct((2, n_nodes, dim), F32),
        grid=(2,),
        in_specs=([pl.BlockSpec((n_nodes, dim), lambda l: (0, 0)),
                   pl.BlockSpec(block_ones.shape, lambda l: (0, 0))]
                  + [_stacked_spec(a) for a in stacked]),
        out_specs=pl.BlockSpec((1, n_nodes, dim), lambda l: (l, 0, 0)),
        compiler_params=pltpu.CompilerParams(
            dimension_semantics=("parallel",),
            vmem_limit_bytes=_VMEM_LIMIT),
    )(node_emb, block_ones, *stacked)

    gru = params['gru']
    y_full = pl.pallas_call(
        functools.partial(_gru_readout_kernel, dim=dim * cfg['layer']),
        out_shape=jax.ShapeDtypeStruct((n_graphs, 128), F32),
        in_specs=[pl.BlockSpec(memory_space=pltpu.MemorySpace.VMEM)] * 13,
        out_specs=pl.BlockSpec(memory_space=pltpu.MemorySpace.VMEM),
        compiler_params=pltpu.CompilerParams(vmem_limit_bytes=_VMEM_LIMIT),
    )(node_emb, msgs, gru_h0,
      gru['w_ih'], gru['w_hh'], gru['b_ih'], gru['b_hh'],
      pool_item, pool_user, inv_item, inv_user, batch_oh, node_w)
    return y_full[:, :1]


# ----------------------------------------------------------------------------
# Deterministic parameter init (shapes from MGNN_IS.__init__ / MGNN_ISLayer)
# ----------------------------------------------------------------------------
def _lin_init(key, fan_in, fan_out):
    kw, kb = jax.random.split(key)
    w = jax.random.normal(kw, (fan_in, fan_out), F32) / np.sqrt(fan_in)
    b = jax.random.normal(kb, (1, fan_out), F32) * 0.01
    return w, b


def init_mgnn_layer_params(key, dim, heads, hidden):
    ks = jax.random.split(key, 5)
    lin1_w, lin1_b = _lin_init(ks[0], dim, dim * heads)
    p_w1, p_b1 = _lin_init(ks[1], dim, hidden)
    p_w2, p_b2 = _lin_init(ks[2], hidden, 1)
    wa_w, wa_b = _lin_init(ks[3], dim, dim)
    att = jax.random.normal(ks[4], (1, heads * dim), F32) * np.sqrt(
        2.0 / (heads * dim + dim))                 # glorot-style
    return dict(lin1_w=lin1_w, lin1_b=lin1_b,
                p_w1=p_w1, p_b1=p_b1, p_bias1=jnp.zeros((1, hidden), F32),
                p_w2=p_w2, p_b2=p_b2, p_bias2=jnp.zeros((1, 1), F32),
                wa_w=wa_w, wa_b=wa_b, att=att,
                bias=jnp.zeros((1, heads * dim), F32))


def init_params(key, n_features, cfg):
    dim, heads, hidden = cfg['dim'], cfg['heads'], cfg['hidden_layer']
    ks = jax.random.split(key, 10)
    params = {
        'feature_embedding': jax.random.normal(ks[0], (n_features + 2, dim), F32),
        'node_weight': jax.random.normal(ks[1], (n_features + 2, 1), F32) * 0.01,
        'inner': init_mgnn_layer_params(ks[2], dim, heads, hidden),
        'outer': init_mgnn_layer_params(ks[3], dim, heads, hidden),
    }
    params['lin_t1_w'], params['lin_t1_b'] = _lin_init(ks[4], dim * heads, dim)
    params['lin_t2_w'], params['lin_t2_b'] = _lin_init(ks[5], dim * heads, dim)
    dh = dim * cfg['layer']
    params['gru'] = dict(
        w_ih=jax.random.normal(ks[6], (dh, 3 * dh), F32) / np.sqrt(dh),
        w_hh=jax.random.normal(ks[7], (dh, 3 * dh), F32) / np.sqrt(dh),
        b_ih=jax.random.normal(ks[8], (1, 3 * dh), F32) * 0.01,
        b_hh=jax.random.normal(ks[9], (1, 3 * dh), F32) * 0.01)
    return params


if __name__ == "__main__":
    cfg = dict(dim=8, heads=2, hidden_layer=16, layer=1, topk=0.5,
               num_user_features=2, rho=0.5, cl=0, fl=0)
    n_features = 20
    B = 2
    U = cfg['num_user_features']
    n_items = 2
    npg = U + n_items            # nodes per graph
    N = B * npg                  # total nodes

    key = jax.random.PRNGKey(0)
    k_id, k_p, k_h0 = jax.random.split(key, 3)

    # data.x : (N, 1) long node ids
    node_id = jax.random.randint(k_id, (N, 1), 0, n_features + 2, dtype=jnp.int32)
    # data.batch
    batch_np = np.repeat(np.arange(B), npg).astype(np.int64)

    # data.edge_index : fully-connected (no self loops) inside each graph
    inner_src, inner_dst = [], []
    for g in range(B):
        off = g * npg
        for a in range(npg):
            for b_ in range(npg):
                if a != b_:
                    inner_src.append(off + a)
                    inner_dst.append(off + b_)
    inner_edge_index = np.array([inner_src, inner_dst], dtype=np.int64)

    # data.edge_attr.T : per-graph LOCAL user<->item bipartite edges, both dirs
    o_src, o_dst = [], []
    for g in range(B):
        for u in range(U):
            for it in range(U, npg):
                o_src.append(u); o_dst.append(it)
                o_src.append(it); o_dst.append(u)
    outer_edge_local = np.array([o_src, o_dst], dtype=np.int64)

    params = init_params(k_p, n_features, cfg)
    # gru_h0 = torch.normal(0, 0.01, (1, N, dim*layer)) — deterministic here
    gru_h0 = jax.random.normal(k_h0, (N, cfg['dim'] * cfg['layer']), F32) * 0.01

    y = mgnn_is_forward(params, node_id, batch_np, inner_edge_index,
                        outer_edge_local, cfg, gru_h0)
    y = jax.block_until_ready(y)
    assert y.shape == (B, 1)
    assert bool(jnp.all(jnp.isfinite(y)))
    assert bool(jnp.all((y >= 0) & (y <= 1)))
    print("KERNEL_OK")
</pallas_src>

<mosaic_0001>
module attributes {stable_mosaic.version = 11 : i64} {
  func.func @_layer_kernel(%arg0: i32, %arg1: memref<8x8xf32, #tpu.memory_space<vmem>>, %arg2: memref<16x16xbf16, #tpu.memory_space<vmem>>, %arg3: memref<1x24x8xbf16, #tpu.memory_space<vmem>>, %arg4: memref<1x24x8xbf16, #tpu.memory_space<vmem>>, %arg5: memref<1x24x24xbf16, #tpu.memory_space<vmem>>, %arg6: memref<1x24x24xbf16, #tpu.memory_space<vmem>>, %arg7: memref<1x24x1xf32, #tpu.memory_space<vmem>>, %arg8: memref<1x8x1xf32, #tpu.memory_space<vmem>>, %arg9: memref<1x8x16xf32, #tpu.memory_space<vmem>>, %arg10: memref<1x1x16xf32, #tpu.memory_space<vmem>>, %arg11: memref<1x16x1xf32, #tpu.memory_space<vmem>>, %arg12: memref<1x1x1xf32, #tpu.memory_space<vmem>>, %arg13: memref<1x8x16xf32, #tpu.memory_space<vmem>>, %arg14: memref<1x1x16xf32, #tpu.memory_space<vmem>>, %arg15: memref<1x1x16xf32, #tpu.memory_space<vmem>>, %arg16: memref<1x8x16xf32, #tpu.memory_space<vmem>>, %arg17: memref<1x1x16xf32, #tpu.memory_space<vmem>>, %arg18: memref<1x1x16xf32, #tpu.memory_space<vmem>>, %arg19: memref<1x16x8xf32, #tpu.memory_space<vmem>>, %arg20: memref<1x1x8xf32, #tpu.memory_space<vmem>>, %arg21: memref<1x8x8xf32, #tpu.memory_space<vmem>>) attributes {dimension_semantics = [#tpu.dimension_semantics<parallel>], iteration_bounds = array<i64: 2>, scalar_prefetch = 0 : i64, scratch_operands = 0 : i64, tpu.core_type = #tpu.core_type<tc>, window_params = [{pipeline_mode = #tpu.pipeline_mode<synchronous>, transform_indices = @transform_0, window_bounds = array<i64: 8, 8>}, {pipeline_mode = #tpu.pipeline_mode<synchronous>, transform_indices = @transform_1, window_bounds = array<i64: 16, 16>}, {transform_indices = @transform_2, window_bounds = array<i64: 1, 24, 8>}, {transform_indices = @transform_3, window_bounds = array<i64: 1, 24, 8>}, {transform_indices = @transform_4, window_bounds = array<i64: 1, 24, 24>}, {transform_indices = @transform_5, window_bounds = array<i64: 1, 24, 24>}, {transform_indices = @transform_6, window_bounds = array<i64: 1, 24, 1>}, {transform_indices = @transform_7, window_bounds = array<i64: 1, 8, 1>}, {transform_indices = @transform_8, window_bounds = array<i64: 1, 8, 16>}, {transform_indices = @transform_9, window_bounds = array<i64: 1, 1, 16>}, {transform_indices = @transform_10, window_bounds = array<i64: 1, 16, 1>}, {transform_indices = @transform_11, window_bounds = array<i64: 1, 1, 1>}, {transform_indices = @transform_12, window_bounds = array<i64: 1, 8, 16>}, {transform_indices = @transform_13, window_bounds = array<i64: 1, 1, 16>}, {transform_indices = @transform_14, window_bounds = array<i64: 1, 1, 16>}, {transform_indices = @transform_15, window_bounds = array<i64: 1, 8, 16>}, {transform_indices = @transform_16, window_bounds = array<i64: 1, 1, 16>}, {transform_indices = @transform_17, window_bounds = array<i64: 1, 1, 16>}, {transform_indices = @transform_18, window_bounds = array<i64: 1, 16, 8>}, {transform_indices = @transform_19, window_bounds = array<i64: 1, 1, 8>}, {transform_indices = @transform_20, window_bounds = array<i64: 1, 8, 8>}]} {
    %c0 = arith.constant 0 : index
    %c0_0 = arith.constant 0 : index
    %0 = vector.load %arg1[%c0, %c0_0] : memref<8x8xf32, #tpu.memory_space<vmem>>, vector<8x8xf32>
    %c0_1 = arith.constant 0 : index
    %c0_2 = arith.constant 0 : index
    %c0_3 = arith.constant 0 : index
    %1 = vector.load %arg3[%c0_1, %c0_2, %c0_3] : memref<1x24x8xbf16, #tpu.memory_space<vmem>>, vector<1x24x8xbf16>
    %2 = vector.shape_cast %1 : vector<1x24x8xbf16> to vector<24x8xbf16>
    %3 = arith.extf %2 : vector<24x8xbf16> to vector<24x8xf32>
    %c0_4 = arith.constant 0 : index
    %c0_5 = arith.constant 0 : index
    %c0_6 = arith.constant 0 : index
    %4 = vector.load %arg4[%c0_4, %c0_5, %c0_6] : memref<1x24x8xbf16, #tpu.memory_space<vmem>>, vector<1x24x8xbf16>
    %5 = vector.shape_cast %4 : vector<1x24x8xbf16> to vector<24x8xbf16>
    %6 = arith.extf %5 : vector<24x8xbf16> to vector<24x8xf32>
    %cst = arith.constant dense<0.000000e+00> : vector<24x8xf32>
    %7 = tpu.matmul %6, %0, %cst {dimension_numbers = #tpu.dot_dimension_numbers<[1], [0], [0], [1], [0, 0, 1, 1], [], []>} : vector<24x8xf32>, vector<8x8xf32>, vector<24x8xf32> -> vector<24x8xf32>
    %cst_7 = arith.constant dense<0.000000e+00> : vector<24x8xf32>
    %8 = tpu.matmul %3, %0, %cst_7 {dimension_numbers = #tpu.dot_dimension_numbers<[1], [0], [0], [1], [0, 0, 1, 1], [], []>} : vector<24x8xf32>, vector<8x8xf32>, vector<24x8xf32> -> vector<24x8xf32>
    %9 = arith.mulf %7, %8 : vector<24x8xf32>
    %c0_8 = arith.constant 0 : index
    %c0_9 = arith.constant 0 : index
    %c0_10 = arith.constant 0 : index
    %10 = vector.load %arg9[%c0_8, %c0_9, %c0_10] : memref<1x8x16xf32, #tpu.memory_space<vmem>>, vector<1x8x16xf32>
    %11 = vector.shape_cast %10 : vector<1x8x16xf32> to vector<8x16xf32>
    %cst_11 = arith.constant dense<0.000000e+00> : vector<24x16xf32>
    %12 = tpu.matmul %9, %11, %cst_11 {dimension_numbers = #tpu.dot_dimension_numbers<[1], [0], [0], [1], [0, 0, 1, 1], [], []>} : vector<24x8xf32>, vector<8x16xf32>, vector<24x16xf32> -> vector<24x16xf32>
    %c0_12 = arith.constant 0 : index
    %c0_13 = arith.constant 0 : index
    %c0_14 = arith.constant 0 : index
    %13 = vector.load %arg10[%c0_12, %c0_13, %c0_14] : memref<1x1x16xf32, #tpu.memory_space<vmem>>, vector<1x1x16xf32>
    %14 = vector.shape_cast %13 : vector<1x1x16xf32> to vector<1x16xf32>
    %15 = vector.broadcast %14 : vector<1x16xf32> to vector<24x16xf32>
    %16 = arith.addf %12, %15 : vector<24x16xf32>
    %cst_15 = arith.constant 0.000000e+00 : f32
    %17 = vector.broadcast %cst_15 : f32 to vector<24x16xf32>
    %18 = arith.maximumf %16, %17 : vector<24x16xf32>
    %c0_16 = arith.constant 0 : index
    %c0_17 = arith.constant 0 : index
    %c0_18 = arith.constant 0 : index
    %19 = vector.load %arg11[%c0_16, %c0_17, %c0_18] : memref<1x16x1xf32, #tpu.memory_space<vmem>>, vector<1x16x1xf32>
    %20 = vector.shape_cast %19 : vector<1x16x1xf32> to vector<16x1xf32>
    %cst_19 = arith.constant dense<0.000000e+00> : vector<24x1xf32>
    %21 = tpu.matmul %18, %20, %cst_19 {dimension_numbers = #tpu.dot_dimension_numbers<[1], [0], [0], [1], [0, 0, 1, 1], [], []>} : vector<24x16xf32>, vector<16x1xf32>, vector<24x1xf32> -> vector<24x1xf32>
    %c0_20 = arith.constant 0 : index
    %c0_21 = arith.constant 0 : index
    %c0_22 = arith.constant 0 : index
    %22 = vector.load %arg12[%c0_20, %c0_21, %c0_22] : memref<1x1x1xf32, #tpu.memory_space<vmem>>, vector<1x1x1xf32>
    %23 = vector.shape_cast %22 : vector<1x1x1xf32> to vector<1x1xf32>
    %24 = vector.broadcast %23 : vector<1x1xf32> to vector<24x1xf32>
    %25 = arith.addf %21, %24 : vector<24x1xf32>
    %26 = arith.negf %25 : vector<24x1xf32>
    %27 = math.exp %26 : vector<24x1xf32>
    %cst_23 = arith.constant 1.000000e+00 : f32
    %28 = vector.broadcast %cst_23 : f32 to vector<24x1xf32>
    %29 = arith.addf %28, %27 : vector<24x1xf32>
    %30 = arith.divf %28, %29 : vector<24x1xf32>
    %c0_24 = arith.constant 0 : index
    %c0_25 = arith.constant 0 : index
    %c0_26 = arith.constant 0 : index
    %31 = vector.load %arg13[%c0_24, %c0_25, %c0_26] : memref<1x8x16xf32, #tpu.memory_space<vmem>>, vector<1x8x16xf32>
    %32 = vector.shape_cast %31 : vector<1x8x16xf32> to vector<8x16xf32>
    %cst_27 = arith.constant dense<0.000000e+00> : vector<24x16xf32>
    %33 = tpu.matmul %9, %32, %cst_27 {dimension_numbers = #tpu.dot_dimension_numbers<[1], [0], [0], [1], [0, 0, 1, 1], [], []>} : vector<24x8xf32>, vector<8x16xf32>, vector<24x16xf32> -> vector<24x16xf32>
    %c0_28 = arith.constant 0 : index
    %c0_29 = arith.constant 0 : index
    %c0_30 = arith.constant 0 : index
    %34 = vector.load %arg14[%c0_28, %c0_29, %c0_30] : memref<1x1x16xf32, #tpu.memory_space<vmem>>, vector<1x1x16xf32>
    %35 = vector.shape_cast %34 : vector<1x1x16xf32> to vector<1x16xf32>
    %36 = vector.broadcast %35 : vector<1x16xf32> to vector<24x16xf32>
    %37 = arith.addf %33, %36 : vector<24x16xf32>
    %cst_31 = arith.constant 0.000000e+00 : f32
    %38 = vector.broadcast %cst_31 : f32 to vector<24x16xf32>
    %39 = arith.maximumf %37, %38 : vector<24x16xf32>
    %c0_32 = arith.constant 0 : index
    %c0_33 = arith.constant 0 : index
    %c0_34 = arith.constant 0 : index
    %40 = vector.load %arg15[%c0_32, %c0_33, %c0_34] : memref<1x1x16xf32, #tpu.memory_space<vmem>>, vector<1x1x16xf32>
    %41 = vector.shape_cast %40 : vector<1x1x16xf32> to vector<1x16xf32>
    %42 = vector.broadcast %41 : vector<1x16xf32> to vector<24x16xf32>
    %43 = arith.mulf %42, %39 : vector<24x16xf32>
    %cst_35 = arith.constant 0.00999999977 : f32
    %cst_36 = arith.constant 0.000000e+00 : f32
    %44 = vector.broadcast %cst_36 : f32 to vector<24x16xf32>
    %45 = arith.cmpf oge, %43, %44 : vector<24x16xf32>
    %46 = vector.broadcast %cst_35 : f32 to vector<24x16xf32>
    %47 = arith.mulf %46, %43 : vector<24x16xf32>
    %48 = arith.select %45, %43, %47 : vector<24x16xi1>, vector<24x16xf32>
    %c0_37 = arith.constant 0 : index
    %c0_38 = arith.constant 0 : index
    %c0_39 = arith.constant 0 : index
    %49 = vector.load %arg16[%c0_37, %c0_38, %c0_39] : memref<1x8x16xf32, #tpu.memory_space<vmem>>, vector<1x8x16xf32>
    %50 = vector.shape_cast %49 : vector<1x8x16xf32> to vector<8x16xf32>
    %cst_40 = arith.constant dense<0.000000e+00> : vector<24x16xf32>
    %51 = tpu.matmul %9, %50, %cst_40 {dimension_numbers = #tpu.dot_dimension_numbers<[1], [0], [0], [1], [0, 0, 1, 1], [], []>} : vector<24x8xf32>, vector<8x16xf32>, vector<24x16xf32> -> vector<24x16xf32>
    %c0_41 = arith.constant 0 : index
    %c0_42 = arith.constant 0 : index
    %c0_43 = arith.constant 0 : index
    %52 = vector.load %arg17[%c0_41, %c0_42, %c0_43] : memref<1x1x16xf32, #tpu.memory_space<vmem>>, vector<1x1x16xf32>
    %53 = vector.shape_cast %52 : vector<1x1x16xf32> to vector<1x16xf32>
    %54 = vector.broadcast %53 : vector<1x16xf32> to vector<24x16xf32>
    %55 = arith.addf %51, %54 : vector<24x16xf32>
    %c0_44 = arith.constant 0 : index
    %c0_45 = arith.constant 0 : index
    %c0_46 = arith.constant 0 : index
    %56 = vector.load %arg5[%c0_44, %c0_45, %c0_46] : memref<1x24x24xbf16, #tpu.memory_space<vmem>>, vector<1x24x24xbf16>
    %57 = vector.shape_cast %56 : vector<1x24x24xbf16> to vector<24x24xbf16>
    %58 = arith.extf %57 : vector<24x24xbf16> to vector<24x24xf32>
    %c0_47 = arith.constant 0 : index
    %c0_48 = arith.constant 0 : index
    %c0_49 = arith.constant 0 : index
    %59 = vector.load %arg6[%c0_47, %c0_48, %c0_49] : memref<1x24x24xbf16, #tpu.memory_space<vmem>>, vector<1x24x24xbf16>
    %60 = vector.shape_cast %59 : vector<1x24x24xbf16> to vector<24x24xbf16>
    %61 = arith.extf %60 : vector<24x24xbf16> to vector<24x24xf32>
    %cst_50 = arith.constant 1.000000e+00 : f32
    %62 = vector.broadcast %cst_50 : f32 to vector<1x1xf32>
    %cst_51 = arith.constant dense<0.000000e+00> : vector<1x24xf32>
    %63 = tpu.matmul %62, %30, %cst_51 {dimension_numbers = #tpu.dot_dimension_numbers<[1], [1], [0], [0], [0, 0, 1, 0], [], []>} : vector<1x1xf32>, vector<24x1xf32>, vector<1x24xf32> -> vector<1x24xf32>
    %64 = vector.broadcast %63 : vector<1x24xf32> to vector<24x24xf32>
    %65 = vector.broadcast %30 : vector<24x1xf32> to vector<24x24xf32>
    %66 = arith.cmpf ogt, %64, %65 : vector<24x24xf32>
    %67 = arith.extui %66 : vector<24x24xi1> to vector<24x24xi32>
    %68 = arith.sitofp %67 : vector<24x24xi32> to vector<24x24xf32>
    %69 = arith.mulf %58, %68 : vector<24x24xf32>
    %70 = vector.broadcast %63 : vector<1x24xf32> to vector<24x24xf32>
    %71 = vector.broadcast %30 : vector<24x1xf32> to vector<24x24xf32>
    %72 = arith.cmpf oeq, %70, %71 : vector<24x24xf32>
    %73 = arith.extui %72 : vector<24x24xi1> to vector<24x24xi32>
    %74 = arith.sitofp %73 : vector<24x24xi32> to vector<24x24xf32>
    %75 = arith.mulf %61, %74 : vector<24x24xf32>
    %76 = arith.addf %69, %75 : vector<24x24xf32>
    %cst_52 = arith.constant 1.000000e+00 : f32
    %77 = vector.broadcast %cst_52 : f32 to vector<24x1xf32>
    %cst_53 = arith.constant dense<0.000000e+00> : vector<24x1xf32>
    %78 = tpu.matmul %76, %77, %cst_53 {dimension_numbers = #tpu.dot_dimension_numbers<[1], [0], [0], [1], [0, 0, 1, 1], [], []>} : vector<24x24xf32>, vector<24x1xf32>, vector<24x1xf32> -> vector<24x1xf32>
    %c0_54 = arith.constant 0 : index
    %c0_55 = arith.constant 0 : index
    %c0_56 = arith.constant 0 : index
    %79 = vector.load %arg7[%c0_54, %c0_55, %c0_56] : memref<1x24x1xf32, #tpu.memory_space<vmem>>, vector<1x24x1xf32>
    %80 = vector.shape_cast %79 : vector<1x24x1xf32> to vector<24x1xf32>
    %81 = arith.cmpf olt, %78, %80 : vector<24x1xf32>
    %82 = arith.extui %81 : vector<24x1xi1> to vector<24x1xi32>
    %83 = arith.sitofp %82 : vector<24x1xi32> to vector<24x1xf32>
    %84 = arith.mulf %30, %83 : vector<24x1xf32>
    %cst_57 = arith.constant dense<0xFF800000> : vector<16xf32>
    %85 = vector.multi_reduction <maximumf>, %48, %cst_57 [0] : vector<24x16xf32> to vector<16xf32>
    %86 = vector.shape_cast %85 : vector<16xf32> to vector<1x16xf32>
    %87 = vector.broadcast %86 : vector<1x16xf32> to vector<24x16xf32>
    %88 = arith.subf %48, %87 : vector<24x16xf32>
    %89 = math.exp %88 : vector<24x16xf32>
    %cst_58 = arith.constant dense<0.000000e+00> : vector<8x16xf32>
    %90 = tpu.matmul %6, %89, %cst_58 {dimension_numbers = #tpu.dot_dimension_numbers<[0], [0], [1], [1], [0, 1, 1, 1], [], []>} : vector<24x8xf32>, vector<24x16xf32>, vector<8x16xf32> -> vector<8x16xf32>
    %cst_59 = arith.constant dense<0.000000e+00> : vector<24x16xf32>
    %91 = tpu.matmul %6, %90, %cst_59 {dimension_numbers = #tpu.dot_dimension_numbers<[1], [0], [0], [1], [0, 0, 1, 1], [], []>} : vector<24x8xf32>, vector<8x16xf32>, vector<24x16xf32> -> vector<24x16xf32>
    %cst_60 = arith.constant 1.000000e-16 : f32
    %92 = vector.broadcast %cst_60 : f32 to vector<24x16xf32>
    %93 = arith.addf %91, %92 : vector<24x16xf32>
    %94 = arith.divf %89, %93 : vector<24x16xf32>
    %c0_61 = arith.constant 0 : index
    %c0_62 = arith.constant 0 : index
    %95 = vector.load %arg2[%c0_61, %c0_62] : memref<16x16xbf16, #tpu.memory_space<vmem>>, vector<16x16xbf16>
    %96 = arith.extf %95 : vector<16x16xbf16> to vector<16x16xf32>
    %cst_63 = arith.constant dense<0.000000e+00> : vector<24x16xf32>
    %97 = tpu.matmul %94, %96, %cst_63 {dimension_numbers = #tpu.dot_dimension_numbers<[1], [0], [0], [1], [0, 0, 1, 1], [], []>} : vector<24x16xf32>, vector<16x16xf32>, vector<24x16xf32> -> vector<24x16xf32>
    %98 = arith.mulf %55, %97 : vector<24x16xf32>
    %99 = vector.broadcast %84 : vector<24x1xf32> to vector<24x16xf32>
    %100 = arith.mulf %98, %99 : vector<24x16xf32>
    %101 = arith.negf %100 : vector<24x16xf32>
    %102 = math.exp %101 : vector<24x16xf32>
    %cst_64 = arith.constant 1.000000e+00 : f32
    %103 = vector.broadcast %cst_64 : f32 to vector<24x16xf32>
    %104 = arith.addf %103, %102 : vector<24x16xf32>
    %105 = arith.divf %103, %104 : vector<24x16xf32>
    %cst_65 = arith.constant dense<0.000000e+00> : vector<8x16xf32>
    %106 = tpu.matmul %6, %105, %cst_65 {dimension_numbers = #tpu.dot_dimension_numbers<[0], [0], [1], [1], [0, 1, 1, 1], [], []>} : vector<24x8xf32>, vector<24x16xf32>, vector<8x16xf32> -> vector<8x16xf32>
    %c0_66 = arith.constant 0 : index
    %c0_67 = arith.constant 0 : index
    %c0_68 = arith.constant 0 : index
    %107 = vector.load %arg8[%c0_66, %c0_67, %c0_68] : memref<1x8x1xf32, #tpu.memory_space<vmem>>, vector<1x8x1xf32>
    %108 = vector.shape_cast %107 : vector<1x8x1xf32> to vector<8x1xf32>
    %109 = vector.broadcast %108 : vector<8x1xf32> to vector<8x16xf32>
    %110 = arith.mulf %106, %109 : vector<8x16xf32>
    %c0_69 = arith.constant 0 : index
    %c0_70 = arith.constant 0 : index
    %c0_71 = arith.constant 0 : index
    %111 = vector.load %arg18[%c0_69, %c0_70, %c0_71] : memref<1x1x16xf32, #tpu.memory_space<vmem>>, vector<1x1x16xf32>
    %112 = vector.shape_cast %111 : vector<1x1x16xf32> to vector<1x16xf32>
    %113 = vector.broadcast %112 : vector<1x16xf32> to vector<8x16xf32>
    %114 = arith.addf %110, %113 : vector<8x16xf32>
    %c0_72 = arith.constant 0 : index
    %c0_73 = arith.constant 0 : index
    %c0_74 = arith.constant 0 : index
    %115 = vector.load %arg19[%c0_72, %c0_73, %c0_74] : memref<1x16x8xf32, #tpu.memory_space<vmem>>, vector<1x16x8xf32>
    %116 = vector.shape_cast %115 : vector<1x16x8xf32> to vector<16x8xf32>
    %cst_75 = arith.constant dense<0.000000e+00> : vector<8x8xf32>
    %117 = tpu.matmul %114, %116, %cst_75 {dimension_numbers = #tpu.dot_dimension_numbers<[1], [0], [0], [1], [0, 0, 1, 1], [], []>} : vector<8x16xf32>, vector<16x8xf32>, vector<8x8xf32> -> vector<8x8xf32>
    %c0_76 = arith.constant 0 : index
    %c0_77 = arith.constant 0 : index
    %c0_78 = arith.constant 0 : index
    %118 = vector.load %arg20[%c0_76, %c0_77, %c0_78] : memref<1x1x8xf32, #tpu.memory_space<vmem>>, vector<1x1x8xf32>
    %119 = vector.shape_cast %118 : vector<1x1x8xf32> to vector<1x8xf32>
    %120 = vector.broadcast %119 : vector<1x8xf32> to vector<8x8xf32>
    %121 = arith.addf %117, %120 : vector<8x8xf32>
    %c0_79 = arith.constant 0 : index
    %c0_80 = arith.constant 0 : index
    %c0_81 = arith.constant 0 : index
    %122 = vector.load %arg21[%c0_79, %c0_80, %c0_81] : memref<1x8x8xf32, #tpu.memory_space<vmem>>, vector<1x8x8xf32>
    %123 = vector.shape_cast %122 : vector<1x8x8xf32> to vector<8x8xf32>
    %124 = vector.shape_cast %121 : vector<8x8xf32> to vector<1x8x8xf32>
    tpu.vector_store %arg21[%c0_79, %c0_80, %c0_81], %124 {strides = array<i32>} : memref<1x8x8xf32, #tpu.memory_space<vmem>>, vector<1x8x8xf32>,
    return
  }
  func.func @transform_0(%arg0: i32) -> (i32, i32) {
    %c0_i32 = arith.constant 0 : i32
    %c0_i32_0 = arith.constant 0 : i32
    %c0_i32_1 = arith.constant 0 : i32
    return %c0_i32, %c0_i32_0 : i32, i32
  }
  func.func @transform_1(%arg0: i32) -> (i32, i32) {
    %c0_i32 = arith.constant 0 : i32
    %c0_i32_0 = arith.constant 0 : i32
    %c0_i32_1 = arith.constant 0 : i32
    return %c0_i32, %c0_i32_0 : i32, i32
  }
  func.func @transform_2(%arg0: i32) -> (i32, i32, i32) {
    %c0_i32 = arith.constant 0 : i32
    %c0_i32_0 = arith.constant 0 : i32
    %c0_i32_1 = arith.constant 0 : i32
    return %arg0, %c0_i32, %c0_i32_0 : i32, i32, i32
  }
  func.func @transform_3(%arg0: i32) -> (i32, i32, i32) {
    %c0_i32 = arith.constant 0 : i32
    %c0_i32_0 = arith.constant 0 : i32
    %c0_i32_1 = arith.constant 0 : i32
    return %arg0, %c0_i32, %c0_i32_0 : i32, i32, i32
  }
  func.func @transform_4(%arg0: i32) -> (i32, i32, i32) {
    %c0_i32 = arith.constant 0 : i32
    %c0_i32_0 = arith.constant 0 : i32
    %c0_i32_1 = arith.constant 0 : i32
    return %arg0, %c0_i32, %c0_i32_0 : i32, i32, i32
  }
  func.func @transform_5(%arg0: i32) -> (i32, i32, i32) {
    %c0_i32 = arith.constant 0 : i32
    %c0_i32_0 = arith.constant 0 : i32
    %c0_i32_1 = arith.constant 0 : i32
    return %arg0, %c0_i32, %c0_i32_0 : i32, i32, i32
  }
  func.func @transform_6(%arg0: i32) -> (i32, i32, i32) {
    %c0_i32 = arith.constant 0 : i32
    %c0_i32_0 = arith.constant 0 : i32
    %c0_i32_1 = arith.constant 0 : i32
    return %arg0, %c0_i32, %c0_i32_0 : i32, i32, i32
  }
  func.func @transform_7(%arg0: i32) -> (i32, i32, i32) {
    %c0_i32 = arith.constant 0 : i32
    %c0_i32_0 = arith.constant 0 : i32
    %c0_i32_1 = arith.constant 0 : i32
    return %arg0, %c0_i32, %c0_i32_0 : i32, i32, i32
  }
  func.func @transform_8(%arg0: i32) -> (i32, i32, i32) {
    %c0_i32 = arith.constant 0 : i32
    %c0_i32_0 = arith.constant 0 : i32
    %c0_i32_1 = arith.constant 0 : i32
    return %arg0, %c0_i32, %c0_i32_0 : i32, i32, i32
  }
  func.func @transform_9(%arg0: i32) -> (i32, i32, i32) {
    %c0_i32 = arith.constant 0 : i32
    %c0_i32_0 = arith.constant 0 : i32
    %c0_i32_1 = arith.constant 0 : i32
    return %arg0, %c0_i32, %c0_i32_0 : i32, i32, i32
  }
  func.func @transform_10(%arg0: i32) -> (i32, i32, i32) {
    %c0_i32 = arith.constant 0 : i32
    %c0_i32_0 = arith.constant 0 : i32
    %c0_i32_1 = arith.constant 0 : i32
    return %arg0, %c0_i32, %c0_i32_0 : i32, i32, i32
  }
  func.func @transform_11(%arg0: i32) -> (i32, i32, i32) {
    %c0_i32 = arith.constant 0 : i32
    %c0_i32_0 = arith.constant 0 : i32
    %c0_i32_1 = arith.constant 0 : i32
    return %arg0, %c0_i32, %c0_i32_0 : i32, i32, i32
  }
  func.func @transform_12(%arg0: i32) -> (i32, i32, i32) {
    %c0_i32 = arith.constant 0 : i32
    %c0_i32_0 = arith.constant 0 : i32
    %c0_i32_1 = arith.constant 0 : i32
    return %arg0, %c0_i32, %c0_i32_0 : i32, i32, i32
  }
  func.func @transform_13(%arg0: i32) -> (i32, i32, i32) {
    %c0_i32 = arith.constant 0 : i32
    %c0_i32_0 = arith.constant 0 : i32
    %c0_i32_1 = arith.constant 0 : i32
    return %arg0, %c0_i32, %c0_i32_0 : i32, i32, i32
  }
  func.func @transform_14(%arg0: i32) -> (i32, i32, i32) {
    %c0_i32 = arith.constant 0 : i32
    %c0_i32_0 = arith.constant 0 : i32
    %c0_i32_1 = arith.constant 0 : i32
    return %arg0, %c0_i32, %c0_i32_0 : i32, i32, i32
  }
  func.func @transform_15(%arg0: i32) -> (i32, i32, i32) {
    %c0_i32 = arith.constant 0 : i32
    %c0_i32_0 = arith.constant 0 : i32
    %c0_i32_1 = arith.constant 0 : i32
    return %arg0, %c0_i32, %c0_i32_0 : i32, i32, i32
  }
  func.func @transform_16(%arg0: i32) -> (i32, i32, i32) {
    %c0_i32 = arith.constant 0 : i32
    %c0_i32_0 = arith.constant 0 : i32
    %c0_i32_1 = arith.constant 0 : i32
    return %arg0, %c0_i32, %c0_i32_0 : i32, i32, i32
  }
  func.func @transform_17(%arg0: i32) -> (i32, i32, i32) {
    %c0_i32 = arith.constant 0 : i32
    %c0_i32_0 = arith.constant 0 : i32
    %c0_i32_1 = arith.constant 0 : i32
    return %arg0, %c0_i32, %c0_i32_0 : i32, i32, i32
  }
  func.func @transform_18(%arg0: i32) -> (i32, i32, i32) {
    %c0_i32 = arith.constant 0 : i32
    %c0_i32_0 = arith.constant 0 : i32
    %c0_i32_1 = arith.constant 0 : i32
    return %arg0, %c0_i32, %c0_i32_0 : i32, i32, i32
  }
  func.func @transform_19(%arg0: i32) -> (i32, i32, i32) {
    %c0_i32 = arith.constant 0 : i32
    %c0_i32_0 = arith.constant 0 : i32
    %c0_i32_1 = arith.constant 0 : i32
    return %arg0, %c0_i32, %c0_i32_0 : i32, i32, i32
  }
  func.func @transform_20(%arg0: i32) -> (i32, i32, i32) {
    %c0_i32 = arith.constant 0 : i32
    %c0_i32_0 = arith.constant 0 : i32
    %c0_i32_1 = arith.constant 0 : i32
    return %arg0, %c0_i32, %c0_i32_0 : i32, i32, i32
  }
}

</mosaic_0001>

<llo_original>
// kernel: tpu_custom_call.1
$region0: #{tpu_custom_call.1}
  #allocation0 [shape = 'u32[]', space=smem, size = 0x4, offset = 0x4, fixed_abs, tag = 'smem constant byte address 0x4 - core index']
  #allocation1 [shape = 'u32[144,128]{1,0:T(1,128)}', space=vmem, size = 0x12000, scoped, tag = 'internal scratch']
  %s0 = inlined_call_operand.vmem [shape: f32[8,8], index: 0, kind: input, shape index: {}]
  %s1 = inlined_call_operand.vmem [shape: bf16[16,16], index: 1, kind: input, shape index: {}]
  %s2 = inlined_call_operand.vmem [shape: bf16[2,24,8], index: 2, kind: input, shape index: {}]
  %s3 = inlined_call_operand.vmem [shape: bf16[2,24,8], index: 3, kind: input, shape index: {}]
  %s4 = inlined_call_operand.vmem [shape: bf16[2,24,24], index: 4, kind: input, shape index: {}]
  %s5 = inlined_call_operand.vmem [shape: bf16[2,24,24], index: 5, kind: input, shape index: {}]
  %s6 = inlined_call_operand.vmem [shape: f32[2,24,1], index: 6, kind: input, shape index: {}]
  %s7 = inlined_call_operand.vmem [shape: f32[2,8,1], index: 7, kind: input, shape index: {}]
  %s8 = inlined_call_operand.vmem [shape: f32[2,8,16], index: 8, kind: input, shape index: {}]
  %s9 = inlined_call_operand.vmem [shape: f32[2,1,16], index: 9, kind: input, shape index: {}]
  %s10 = inlined_call_operand.vmem [shape: f32[2,16,1], index: 10, kind: input, shape index: {}]
  %s11 = inlined_call_operand.vmem [shape: f32[2,1,1], index: 11, kind: input, shape index: {}]
  %s12 = inlined_call_operand.vmem [shape: f32[2,8,16], index: 12, kind: input, shape index: {}]
  %s13 = inlined_call_operand.vmem [shape: f32[2,1,16], index: 13, kind: input, shape index: {}]
  %s14 = inlined_call_operand.vmem [shape: f32[2,1,16], index: 14, kind: input, shape index: {}]
  %s15 = inlined_call_operand.vmem [shape: f32[2,8,16], index: 15, kind: input, shape index: {}]
  %s16 = inlined_call_operand.vmem [shape: f32[2,1,16], index: 16, kind: input, shape index: {}]
  %s17 = inlined_call_operand.vmem [shape: f32[2,1,16], index: 17, kind: input, shape index: {}]
  %s18 = inlined_call_operand.vmem [shape: f32[2,16,8], index: 18, kind: input, shape index: {}]
  %s19 = inlined_call_operand.vmem [shape: f32[2,1,8], index: 19, kind: input, shape index: {}]
  %s20 = inlined_call_operand.hbm [shape: f32[2,8,8], index: 20, kind: output, shape index: {}]
  %s21 = sld [smem:[#allocation0]]
  $region113: #{tpu_custom_call.1} parent=0
    _
  %s23 = ssub.s32 1, %s21
  %s24 = scalar_select 0, %s23, %s21
  $region1: #{tpu_custom_call.1} parent=0
    #allocation2 [shape = 'u8[8192]{0}', space=vmem, size = 0x2000, scoped, tag = 'output window, operand 0']
    #allocation3 [shape = 's32[2]{0}', space=sflag, size = 0x8, scoped, tag = 'scoped memory for tpu_custom_call.1']
    %25 = vsyncpa [#allocation3], 0
    %s26 = scalar_lea.sflag [#allocation3], 1
    %27 = vsyncpa %s26, 0
    loop: start=0, step=1, limit=4
    $region2: #{tpu_custom_call.1} parent=1 // loop_pre_header
      _
    $region3: #{tpu_custom_call.1} parent=1 // loop_header
      %s29 = sphi 0, %s33
      %p30 = scmp.ge.s32.totalorder %s29, 4
      %s37 = sphi 0, %s37
      %s39 = sphi 0, %s37
      %s40 = sphi 0, %s39
      %s54 = sphi 0, %s40
      %s58 = sphi 0, %s58
      %s60 = sphi 0, %s58
      %s61 = sphi 0, %s60
      %s75 = sphi 0, %s61
      %s81 = sphi 0, %s83
      %s84 = sphi 0, %s81
      %s85 = sphi 0, %s84
      %s101 = sphi 0, %s85
      %s107 = sphi 0, %s109
      %s110 = sphi 0, %s107
      %s111 = sphi 0, %s110
      %s127 = sphi 0, %s111
      %s133 = sphi 0, %s135
      %s136 = sphi 0, %s133
      %s137 = sphi 0, %s136
      %s153 = sphi 0, %s137
      %s159 = sphi 0, %s161
      %s162 = sphi 0, %s159
      %s163 = sphi 0, %s162
      %s179 = sphi 0, %s163
      %s185 = sphi 0, %s187
      %s188 = sphi 0, %s185
      %s189 = sphi 0, %s188
      %s205 = sphi 0, %s189
      %s211 = sphi 0, %s213
      %s214 = sphi 0, %s211
      %s215 = sphi 0, %s214
      %s231 = sphi 0, %s215
      %s237 = sphi 0, %s239
      %s240 = sphi 0, %s237
      %s241 = sphi 0, %s240
      %s257 = sphi 0, %s241
      %s263 = sphi 0, %s265
      %s266 = sphi 0, %s263
      %s267 = sphi 0, %s266
      %s283 = sphi 0, %s267
      %s289 = sphi 0, %s291
      %s292 = sphi 0, %s289
      %s293 = sphi 0, %s292
      %s309 = sphi 0, %s293
      %s315 = sphi 0, %s317
      %s318 = sphi 0, %s315
      %s319 = sphi 0, %s318
      %s335 = sphi 0, %s319
      %s341 = sphi 0, %s343
      %s344 = sphi 0, %s341
      %s345 = sphi 0, %s344
      %s361 = sphi 0, %s345
      %s367 = sphi 0, %s369
      %s370 = sphi 0, %s367
      %s371 = sphi 0, %s370
      %s387 = sphi 0, %s371
      %s393 = sphi 0, %s395
      %s396 = sphi 0, %s393
      %s397 = sphi 0, %s396
      %s413 = sphi 0, %s397
      %s419 = sphi 0, %s421
      %s422 = sphi 0, %s419
      %s423 = sphi 0, %s422
      %s439 = sphi 0, %s423
      %s445 = sphi 0, %s447
      %s448 = sphi 0, %s445
      %s449 = sphi 0, %s448
      %s465 = sphi 0, %s449
      %s471 = sphi 0, %s473
      %s474 = sphi 0, %s471
      %s475 = sphi 0, %s474
      %s491 = sphi 0, %s475
      %s497 = sphi 0, %s499
      %s500 = sphi 0, %s497
      %s501 = sphi 0, %s500
      %s517 = sphi 0, %s501
      %s523 = sphi 0, %s525
      %s526 = sphi 0, %s523
      %s527 = sphi 0, %s526
      %s543 = sphi 0, %s527
      %s549 = sphi 0, %s551
      %s552 = sphi 0, %s549
      %s553 = sphi 0, %s552
      %s569 = sphi 0, %s553
    $region4: #{tpu_custom_call.1} parent=1 // loop_header_branch
      %32 = sbr.rel (%p30) target = $region8
    $region5: #{tpu_custom_call.1} parent=1 // loop_body
      %s34 = ssub.s32 %s29, 1
      %s35 = ssub.s32 %s29, 2
      %s36 = sadd.s32 %s29, 1
      %s38 = sadd.s32 %s37, 1
      %p41 = scmp.eq.s32.totalorder %s29, 1
      %p42 = scmp.ne.s32.totalorder %s37, %s39
      %p43 = scmp.eq.s32.totalorder %s29, 0
      %p44 = por %p42, %p43
      %p45 = scmp.ne.s32.totalorder %s37, %s39
      %p46 = scmp.eq.s32.totalorder %s34, 1
      %p47 = por %p45, %p46
      %p48 = scmp.ne.s32.totalorder %s39, %s40
      %p49 = scmp.eq.s32.totalorder %s34, 0
      %p50 = por %p48, %p49
      %p51 = scmp.ne.s32.totalorder %s39, %s40
      %p52 = scmp.eq.s32.totalorder %s35, 1
      %p53 = por %p51, %p52
      %p55 = scmp.ne.s32.totalorder %s40, %s54
      %p56 = scmp.eq.s32.totalorder %s35, 0
      %p57 = por %p55, %p56
      %s59 = sadd.s32 %s58, 1
      %p62 = scmp.eq.s32.totalorder %s29, 1
      %p63 = scmp.ne.s32.totalorder %s58, %s60
      %p64 = scmp.eq.s32.totalorder %s29, 0
      %p65 = por %p63, %p64
      %p66 = scmp.ne.s32.totalorder %s58, %s60
      %p67 = scmp.eq.s32.totalorder %s34, 1
      %p68 = por %p66, %p67
      %p69 = scmp.ne.s32.totalorder %s60, %s61
      %p70 = scmp.eq.s32.totalorder %s34, 0
      %p71 = por %p69, %p70
      %p72 = scmp.ne.s32.totalorder %s60, %s61
      %p73 = scmp.eq.s32.totalorder %s35, 1
      %p74 = por %p72, %p73
      %p76 = scmp.ne.s32.totalorder %s61, %s75
      %p77 = scmp.eq.s32.totalorder %s35, 0
      %p78 = por %p76, %p77
      %s79 = ssub.s32 %s29, %s36
      %p80 = scmp.eq.s32.totalorder %s79, 0
      %s82 = sadd.s32 %s81, 1
      %s83 = scalar_select %p80, %s81, %s82
      %p86 = pneg %p80
      %p87 = scmp.eq.s32.totalorder %s29, 1
      %p88 = por %p86, %p87
      %p89 = scmp.ne.s32.totalorder %s81, %s84
      %p90 = scmp.eq.s32.totalorder %s29, 0
      %p91 = por %p89, %p90
      %p92 = scmp.ne.s32.totalorder %s81, %s84
      %p93 = scmp.eq.s32.totalorder %s34, 1
      %p94 = por %p92, %p93
      %p95 = scmp.ne.s32.totalorder %s84, %s85
      %p96 = scmp.eq.s32.totalorder %s34, 0
      %p97 = por %p95, %p96
      %p98 = scmp.ne.s32.totalorder %s84, %s85
      %p99 = scmp.eq.s32.totalorder %s35, 1
      %p100 = por %p98, %p99
      %p102 = scmp.ne.s32.totalorder %s85, %s101
      %p103 = scmp.eq.s32.totalorder %s35, 0
      %p104 = por %p102, %p103
      %s105 = ssub.s32 %s29, %s36
      %p106 = scmp.eq.s32.totalorder %s105, 0
      %s108 = sadd.s32 %s107, 1
      %s109 = scalar_select %p106, %s107, %s108
      %p112 = pneg %p106
      %p113 = scmp.eq.s32.totalorder %s29, 1
      %p114 = por %p112, %p113
      %p115 = scmp.ne.s32.totalorder %s107, %s110
      %p116 = scmp.eq.s32.totalorder %s29, 0
      %p117 = por %p115, %p116
      %p118 = scmp.ne.s32.totalorder %s107, %s110
      %p119 = scmp.eq.s32.totalorder %s34, 1
      %p120 = por %p118, %p119
      %p121 = scmp.ne.s32.totalorder %s110, %s111
      %p122 = scmp.eq.s32.totalorder %s34, 0
      %p123 = por %p121, %p122
      %p124 = scmp.ne.s32.totalorder %s110, %s111
      %p125 = scmp.eq.s32.totalorder %s35, 1
      %p126 = por %p124, %p125
      %p128 = scmp.ne.s32.totalorder %s111, %s127
      %p129 = scmp.eq.s32.totalorder %s35, 0
      %p130 = por %p128, %p129
      %s131 = ssub.s32 %s29, %s36
      %p132 = scmp.eq.s32.totalorder %s131, 0
      %s134 = sadd.s32 %s133, 1
      %s135 = scalar_select %p132, %s133, %s134
      %p138 = pneg %p132
      %p139 = scmp.eq.s32.totalorder %s29, 1
      %p140 = por %p138, %p139
      %p141 = scmp.ne.s32.totalorder %s133, %s136
      %p142 = scmp.eq.s32.totalorder %s29, 0
      %p143 = por %p141, %p142
      %p144 = scmp.ne.s32.totalorder %s133, %s136
      %p145 = scmp.eq.s32.totalorder %s34, 1
      %p146 = por %p144, %p145
      %p147 = scmp.ne.s32.totalorder %s136, %s137
      %p148 = scmp.eq.s32.totalorder %s34, 0
      %p149 = por %p147, %p148
      %p150 = scmp.ne.s32.totalorder %s136, %s137
      %p151 = scmp.eq.s32.totalorder %s35, 1
      %p152 = por %p150, %p151
      %p154 = scmp.ne.s32.totalorder %s137, %s153
      %p155 = scmp.eq.s32.totalorder %s35, 0
      %p156 = por %p154, %p155
      %s157 = ssub.s32 %s29, %s36
      %p158 = scmp.eq.s32.totalorder %s157, 0
      %s160 = sadd.s32 %s159, 1
      %s161 = scalar_select %p158, %s159, %s160
      %p164 = pneg %p158
      %p165 = scmp.eq.s32.totalorder %s29, 1
      %p166 = por %p164, %p165
      %p167 = scmp.ne.s32.totalorder %s159, %s162
      %p168 = scmp.eq.s32.totalorder %s29, 0
      %p169 = por %p167, %p168
      %p170 = scmp.ne.s32.totalorder %s159, %s162
      %p171 = scmp.eq.s32.totalorder %s34, 1
      %p172 = por %p170, %p171
      %p173 = scmp.ne.s32.totalorder %s162, %s163
      %p174 = scmp.eq.s32.totalorder %s34, 0
      %p175 = por %p173, %p174
      %p176 = scmp.ne.s32.totalorder %s162, %s163
      %p177 = scmp.eq.s32.totalorder %s35, 1
      %p178 = por %p176, %p177
      %p180 = scmp.ne.s32.totalorder %s163, %s179
      %p181 = scmp.eq.s32.totalorder %s35, 0
      %p182 = por %p180, %p181
      %s183 = ssub.s32 %s29, %s36
      %p184 = scmp.eq.s32.totalorder %s183, 0
      %s186 = sadd.s32 %s185, 1
      %s187 = scalar_select %p184, %s185, %s186
      %p190 = pneg %p184
      %p191 = scmp.eq.s32.totalorder %s29, 1
      %p192 = por %p190, %p191
      %p193 = scmp.ne.s32.totalorder %s185, %s188
      %p194 = scmp.eq.s32.totalorder %s29, 0
      %p195 = por %p193, %p194
      %p196 = scmp.ne.s32.totalorder %s185, %s188
      %p197 = scmp.eq.s32.totalorder %s34, 1
      %p198 = por %p196, %p197
      %p199 = scmp.ne.s32.totalorder %s188, %s189
      %p200 = scmp.eq.s32.totalorder %s34, 0
      %p201 = por %p199, %p200
      %p202 = scmp.ne.s32.totalorder %s188, %s189
      %p203 = scmp.eq.s32.totalorder %s35, 1
      %p204 = por %p202, %p203
      %p206 = scmp.ne.s32.totalorder %s189, %s205
      %p207 = scmp.eq.s32.totalorder %s35, 0
      %p208 = por %p206, %p207
      %s209 = ssub.s32 %s29, %s36
      %p210 = scmp.eq.s32.totalorder %s209, 0
      %s212 = sadd.s32 %s211, 1
      %s213 = scalar_select %p210, %s211, %s212
      %p216 = pneg %p210
      %p217 = scmp.eq.s32.totalorder %s29, 1
      %p218 = por %p216, %p217
      %p219 = scmp.ne.s32.totalorder %s211, %s214
      %p220 = scmp.eq.s32.totalorder %s29, 0
      %p221 = por %p219, %p220
      %p222 = scmp.ne.s32.totalorder %s211, %s214
      %p223 = scmp.eq.s32.totalorder %s34, 1
      %p224 = por %p222, %p223
      %p225 = scmp.ne.s32.totalorder %s214, %s215
      %p226 = scmp.eq.s32.totalorder %s34, 0
      %p227 = por %p225, %p226
      %p228 = scmp.ne.s32.totalorder %s214, %s215
      %p229 = scmp.eq.s32.totalorder %s35, 1
      %p230 = por %p228, %p229
      %p232 = scmp.ne.s32.totalorder %s215, %s231
      %p233 = scmp.eq.s32.totalorder %s35, 0
      %p234 = por %p232, %p233
      %s235 = ssub.s32 %s29, %s36
      %p236 = scmp.eq.s32.totalorder %s235, 0
      %s238 = sadd.s32 %s237, 1
      %s239 = scalar_select %p236, %s237, %s238
      %p242 = pneg %p236
      %p243 = scmp.eq.s32.totalorder %s29, 1
      %p244 = por %p242, %p243
      %p245 = scmp.ne.s32.totalorder %s237, %s240
      %p246 = scmp.eq.s32.totalorder %s29, 0
      %p247 = por %p245, %p246
      %p248 = scmp.ne.s32.totalorder %s237, %s240
      %p249 = scmp.eq.s32.totalorder %s34, 1
      %p250 = por %p248, %p249
      %p251 = scmp.ne.s32.totalorder %s240, %s241
      %p252 = scmp.eq.s32.totalorder %s34, 0
      %p253 = por %p251, %p252
      %p254 = scmp.ne.s32.totalorder %s240, %s241
      %p255 = scmp.eq.s32.totalorder %s35, 1
      %p256 = por %p254, %p255
      %p258 = scmp.ne.s32.totalorder %s241, %s257
      %p259 = scmp.eq.s32.totalorder %s35, 0
      %p260 = por %p258, %p259
      %s261 = ssub.s32 %s29, %s36
      %p262 = scmp.eq.s32.totalorder %s261, 0
      %s264 = sadd.s32 %s263, 1
      %s265 = scalar_select %p262, %s263, %s264
      %p268 = pneg %p262
      %p269 = scmp.eq.s32.totalorder %s29, 1
      %p270 = por %p268, %p269
      %p271 = scmp.ne.s32.totalorder %s263, %s266
      %p272 = scmp.eq.s32.totalorder %s29, 0
      %p273 = por %p271, %p272
      %p274 = scmp.ne.s32.totalorder %s263, %s266
      %p275 = scmp.eq.s32.totalorder %s34, 1
      %p276 = por %p274, %p275
      %p277 = scmp.ne.s32.totalorder %s266, %s267
      %p278 = scmp.eq.s32.totalorder %s34, 0
      %p279 = por %p277, %p278
      %p280 = scmp.ne.s32.totalorder %s266, %s267
      %p281 = scmp.eq.s32.totalorder %s35, 1
      %p282 = por %p280, %p281
      %p284 = scmp.ne.s32.totalorder %s267, %s283
      %p285 = scmp.eq.s32.totalorder %s35, 0
      %p286 = por %p284, %p285
      %s287 = ssub.s32 %s29, %s36
      %p288 = scmp.eq.s32.totalorder %s287, 0
      %s290 = sadd.s32 %s289, 1
      %s291 = scalar_select %p288, %s289, %s290
      %p294 = pneg %p288
      %p295 = scmp.eq.s32.totalorder %s29, 1
      %p296 = por %p294, %p295
      %p297 = scmp.ne.s32.totalorder %s289, %s292
      %p298 = scmp.eq.s32.totalorder %s29, 0
      %p299 = por %p297, %p298
      %p300 = scmp.ne.s32.totalorder %s289, %s292
      %p301 = scmp.eq.s32.totalorder %s34, 1
      %p302 = por %p300, %p301
      %p303 = scmp.ne.s32.totalorder %s292, %s293
      %p304 = scmp.eq.s32.totalorder %s34, 0
      %p305 = por %p303, %p304
      %p306 = scmp.ne.s32.totalorder %s292, %s293
      %p307 = scmp.eq.s32.totalorder %s35, 1
      %p308 = por %p306, %p307
      %p310 = scmp.ne.s32.totalorder %s293, %s309
      %p311 = scmp.eq.s32.totalorder %s35, 0
      %p312 = por %p310, %p311
      %s313 = ssub.s32 %s29, %s36
      %p314 = scmp.eq.s32.totalorder %s313, 0
      %s316 = sadd.s32 %s315, 1
      %s317 = scalar_select %p314, %s315, %s316
      %p320 = pneg %p314
      %p321 = scmp.eq.s32.totalorder %s29, 1
      %p322 = por %p320, %p321
      %p323 = scmp.ne.s32.totalorder %s315, %s318
      %p324 = scmp.eq.s32.totalorder %s29, 0
      %p325 = por %p323, %p324
      %p326 = scmp.ne.s32.totalorder %s315, %s318
      %p327 = scmp.eq.s32.totalorder %s34, 1
      %p328 = por %p326, %p327
      %p329 = scmp.ne.s32.totalorder %s318, %s319
      %p330 = scmp.eq.s32.totalorder %s34, 0
      %p331 = por %p329, %p330
      %p332 = scmp.ne.s32.totalorder %s318, %s319
      %p333 = scmp.eq.s32.totalorder %s35, 1
      %p334 = por %p332, %p333
      %p336 = scmp.ne.s32.totalorder %s319, %s335
      %p337 = scmp.eq.s32.totalorder %s35, 0
      %p338 = por %p336, %p337
      %s339 = ssub.s32 %s29, %s36
      %p340 = scmp.eq.s32.totalorder %s339, 0
      %s342 = sadd.s32 %s341, 1
      %s343 = scalar_select %p340, %s341, %s342
      %p346 = pneg %p340
      %p347 = scmp.eq.s32.totalorder %s29, 1
      %p348 = por %p346, %p347
      %p349 = scmp.ne.s32.totalorder %s341, %s344
      %p350 = scmp.eq.s32.totalorder %s29, 0
      %p351 = por %p349, %p350
      %p352 = scmp.ne.s32.totalorder %s341, %s344
      %p353 = scmp.eq.s32.totalorder %s34, 1
      %p354 = por %p352, %p353
      %p355 = scmp.ne.s32.totalorder %s344, %s345
      %p356 = scmp.eq.s32.totalorder %s34, 0
      %p357 = por %p355, %p356
      %p358 = scmp.ne.s32.totalorder %s344, %s345
      %p359 = scmp.eq.s32.totalorder %s35, 1
      %p360 = por %p358, %p359
      %p362 = scmp.ne.s32.totalorder %s345, %s361
      %p363 = scmp.eq.s32.totalorder %s35, 0
      %p364 = por %p362, %p363
      %s365 = ssub.s32 %s29, %s36
      %p366 = scmp.eq.s32.totalorder %s365, 0
      %s368 = sadd.s32 %s367, 1
      %s369 = scalar_select %p366, %s367, %s368
      %p372 = pneg %p366
      %p373 = scmp.eq.s32.totalorder %s29, 1
      %p374 = por %p372, %p373
      %p375 = scmp.ne.s32.totalorder %s367, %s370
      %p376 = scmp.eq.s32.totalorder %s29, 0
      %p377 = por %p375, %p376
      %p378 = scmp.ne.s32.totalorder %s367, %s370
      %p379 = scmp.eq.s32.totalorder %s34, 1
      %p380 = por %p378, %p379
      %p381 = scmp.ne.s32.totalorder %s370, %s371
      %p382 = scmp.eq.s32.totalorder %s34, 0
      %p383 = por %p381, %p382
      %p384 = scmp.ne.s32.totalorder %s370, %s371
      %p385 = scmp.eq.s32.totalorder %s35, 1
      %p386 = por %p384, %p385
      %p388 = scmp.ne.s32.totalorder %s371, %s387
      %p389 = scmp.eq.s32.totalorder %s35, 0
      %p390 = por %p388, %p389
      %s391 = ssub.s32 %s29, %s36
      %p392 = scmp.eq.s32.totalorder %s391, 0
      %s394 = sadd.s32 %s393, 1
      %s395 = scalar_select %p392, %s393, %s394
      %p398 = pneg %p392
      %p399 = scmp.eq.s32.totalorder %s29, 1
      %p400 = por %p398, %p399
      %p401 = scmp.ne.s32.totalorder %s393, %s396
      %p402 = scmp.eq.s32.totalorder %s29, 0
      %p403 = por %p401, %p402
      %p404 = scmp.ne.s32.totalorder %s393, %s396
      %p405 = scmp.eq.s32.totalorder %s34, 1
      %p406 = por %p404, %p405
      %p407 = scmp.ne.s32.totalorder %s396, %s397
      %p408 = scmp.eq.s32.totalorder %s34, 0
      %p409 = por %p407, %p408
      %p410 = scmp.ne.s32.totalorder %s396, %s397
      %p411 = scmp.eq.s32.totalorder %s35, 1
      %p412 = por %p410, %p411
      %p414 = scmp.ne.s32.totalorder %s397, %s413
      %p415 = scmp.eq.s32.totalorder %s35, 0
      %p416 = por %p414, %p415
      %s417 = ssub.s32 %s29, %s36
      %p418 = scmp.eq.s32.totalorder %s417, 0
      %s420 = sadd.s32 %s419, 1
      %s421 = scalar_select %p418, %s419, %s420
      %p424 = pneg %p418
      %p425 = scmp.eq.s32.totalorder %s29, 1
      %p426 = por %p424, %p425
      %p427 = scmp.ne.s32.totalorder %s419, %s422
      %p428 = scmp.eq.s32.totalorder %s29, 0
      %p429 = por %p427, %p428
      %p430 = scmp.ne.s32.totalorder %s419, %s422
      %p431 = scmp.eq.s32.totalorder %s34, 1
      %p432 = por %p430, %p431
      %p433 = scmp.ne.s32.totalorder %s422, %s423
      %p434 = scmp.eq.s32.totalorder %s34, 0
      %p435 = por %p433, %p434
      %p436 = scmp.ne.s32.totalorder %s422, %s423
      %p437 = scmp.eq.s32.totalorder %s35, 1
      %p438 = por %p436, %p437
      %p440 = scmp.ne.s32.totalorder %s423, %s439
      %p441 = scmp.eq.s32.totalorder %s35, 0
      %p442 = por %p440, %p441
      %s443 = ssub.s32 %s29, %s36
      %p444 = scmp.eq.s32.totalorder %s443, 0
      %s446 = sadd.s32 %s445, 1
      %s447 = scalar_select %p444, %s445, %s446
      %p450 = pneg %p444
      %p451 = scmp.eq.s32.totalorder %s29, 1
      %p452 = por %p450, %p451
      %p453 = scmp.ne.s32.totalorder %s445, %s448
      %p454 = scmp.eq.s32.totalorder %s29, 0
      %p455 = por %p453, %p454
      %p456 = scmp.ne.s32.totalorder %s445, %s448
      %p457 = scmp.eq.s32.totalorder %s34, 1
      %p458 = por %p456, %p457
      %p459 = scmp.ne.s32.totalorder %s448, %s449
      %p460 = scmp.eq.s32.totalorder %s34, 0
      %p461 = por %p459, %p460
      %p462 = scmp.ne.s32.totalorder %s448, %s449
      %p463 = scmp.eq.s32.totalorder %s35, 1
      %p464 = por %p462, %p463
      %p466 = scmp.ne.s32.totalorder %s449, %s465
      %p467 = scmp.eq.s32.totalorder %s35, 0
      %p468 = por %p466, %p467
      %s469 = ssub.s32 %s29, %s36
      %p470 = scmp.eq.s32.totalorder %s469, 0
      %s472 = sadd.s32 %s471, 1
      %s473 = scalar_select %p470, %s471, %s472
      %p476 = pneg %p470
      %p477 = scmp.eq.s32.totalorder %s29, 1
      %p478 = por %p476, %p477
      %p479 = scmp.ne.s32.totalorder %s471, %s474
      %p480 = scmp.eq.s32.totalorder %s29, 0
      %p481 = por %p479, %p480
      %p482 = scmp.ne.s32.totalorder %s471, %s474
      %p483 = scmp.eq.s32.totalorder %s34, 1
      %p484 = por %p482, %p483
      %p485 = scmp.ne.s32.totalorder %s474, %s475
      %p486 = scmp.eq.s32.totalorder %s34, 0
      %p487 = por %p485, %p486
      %p488 = scmp.ne.s32.totalorder %s474, %s475
      %p489 = scmp.eq.s32.totalorder %s35, 1
      %p490 = por %p488, %p489
      %p492 = scmp.ne.s32.totalorder %s475, %s491
      %p493 = scmp.eq.s32.totalorder %s35, 0
      %p494 = por %p492, %p493
      %s495 = ssub.s32 %s29, %s36
      %p496 = scmp.eq.s32.totalorder %s495, 0
      %s498 = sadd.s32 %s497, 1
      %s499 = scalar_select %p496, %s497, %s498
      %p502 = pneg %p496
      %p503 = scmp.eq.s32.totalorder %s29, 1
      %p504 = por %p502, %p503
      %p505 = scmp.ne.s32.totalorder %s497, %s500
      %p506 = scmp.eq.s32.totalorder %s29, 0
      %p507 = por %p505, %p506
      %p508 = scmp.ne.s32.totalorder %s497, %s500
      %p509 = scmp.eq.s32.totalorder %s34, 1
      %p510 = por %p508, %p509
      %p511 = scmp.ne.s32.totalorder %s500, %s501
      %p512 = scmp.eq.s32.totalorder %s34, 0
      %p513 = por %p511, %p512
      %p514 = scmp.ne.s32.totalorder %s500, %s501
      %p515 = scmp.eq.s32.totalorder %s35, 1
      %p516 = por %p514, %p515
      %p518 = scmp.ne.s32.totalorder %s501, %s517
      %p519 = scmp.eq.s32.totalorder %s35, 0
      %p520 = por %p518, %p519
      %s521 = ssub.s32 %s29, %s36
      %p522 = scmp.eq.s32.totalorder %s521, 0
      %s524 = sadd.s32 %s523, 1
      %s525 = scalar_select %p522, %s523, %s524
      %p528 = pneg %p522
      %p529 = scmp.eq.s32.totalorder %s29, 1
      %p530 = por %p528, %p529
      %p531 = scmp.ne.s32.totalorder %s523, %s526
      %p532 = scmp.eq.s32.totalorder %s29, 0
      %p533 = por %p531, %p532
      %p534 = scmp.ne.s32.totalorder %s523, %s526
      %p535 = scmp.eq.s32.totalorder %s34, 1
      %p536 = por %p534, %p535
      %p537 = scmp.ne.s32.totalorder %s526, %s527
      %p538 = scmp.eq.s32.totalorder %s34, 0
      %p539 = por %p537, %p538
      %p540 = scmp.ne.s32.totalorder %s526, %s527
      %p541 = scmp.eq.s32.totalorder %s35, 1
      %p542 = por %p540, %p541
      %p544 = scmp.ne.s32.totalorder %s527, %s543
      %p545 = scmp.eq.s32.totalorder %s35, 0
      %p546 = por %p544, %p545
      %s547 = ssub.s32 %s29, %s36
      %p548 = scmp.eq.s32.totalorder %s547, 0
      %s550 = sadd.s32 %s549, 1
      %s551 = scalar_select %p548, %s549, %s550
      %p554 = pneg %p548
      %p555 = scmp.eq.s32.totalorder %s29, 1
      %p556 = por %p554, %p555
      %p557 = scmp.ne.s32.totalorder %s549, %s552
      %p558 = scmp.eq.s32.totalorder %s29, 0
      %p559 = por %p557, %p558
      %p560 = scmp.ne.s32.totalorder %s549, %s552
      %p561 = scmp.eq.s32.totalorder %s34, 1
      %p562 = por %p560, %p561
      %p563 = scmp.ne.s32.totalorder %s552, %s553
      %p564 = scmp.eq.s32.totalorder %s34, 0
      %p565 = por %p563, %p564
      %p566 = scmp.ne.s32.totalorder %s552, %s553
      %p567 = scmp.eq.s32.totalorder %s35, 1
      %p568 = por %p566, %p567
      %p570 = scmp.ne.s32.totalorder %s553, %s569
      %p571 = scmp.eq.s32.totalorder %s35, 0
      %p572 = por %p570, %p571
      %p573 = scmp.le.s32.totalorder 1, %s29
      %p574 = scmp.lt.s32.totalorder %s29, 3
      %p575 = pnand %p573, %p574
      %p576 = pneg %p575
      // Predicated region
      $region9: #{tpu_custom_call.1} parent=5 // pred_check
        _
      $region10: #{tpu_custom_call.1} parent=5 // pred_check_branch
        %578 = sbr.rel (%p575) target = $region12
      $region11: #{tpu_custom_call.1} parent=5 // pred_region
        %s579 = ssub.s32 %s29, 1
        // Predicated region
        $region13: #{tpu_custom_call.1} parent=11 // pred_check
          %p580 = pneg %p50
        $region14: #{tpu_custom_call.1} parent=11 // pred_check_branch
          %582 = sbr.rel (%p580) target = $region16
        $region15: #{tpu_custom_call.1} parent=11 // pred_region
          _
        $region16: #{tpu_custom_call.1} parent=11 // pred_fallthru
          _
        // Predicated region
        $region17: #{tpu_custom_call.1} parent=11 // pred_check
          %p583 = pneg %p71
        $region18: #{tpu_custom_call.1} parent=11 // pred_check_branch
          %585 = sbr.rel (%p583) target = $region20
        $region19: #{tpu_custom_call.1} parent=11 // pred_region
          _
        $region20: #{tpu_custom_call.1} parent=11 // pred_fallthru
          _
      $region12: #{tpu_custom_call.1} parent=5 // pred_fallthru
        _
      %p586 = scmp.lt.s32.totalorder %s29, 2
      // Predicated region
      $region21: #{tpu_custom_call.1} parent=5 // pred_check
        %p587 = pneg %p586
      $region22: #{tpu_custom_call.1} parent=5 // pred_check_branch
        %589 = sbr.rel (%p587) target = $region24
      $region23: #{tpu_custom_call.1} parent=5 // pred_region
        // Predicated region
        $region25: #{tpu_custom_call.1} parent=23 // pred_check
          %p590 = pneg %p91
        $region26: #{tpu_custom_call.1} parent=23 // pred_check_branch
          %592 = sbr.rel (%p590) target = $region28
        $region27: #{tpu_custom_call.1} parent=23 // pred_region
          %p593 = scmp.lt.s32.totalorder %s29, 1
          %s594 = scalar_select %p593, %s29, 1
          %s595 = smul.addr %s594, 3
          %s596 = smul.addr %s595, 4
          %s597 = scalar_lea.vmem %s2, %s596
        $region28: #{tpu_custom_call.1} parent=23 // pred_fallthru
          _
        // Predicated region
        $region29: #{tpu_custom_call.1} parent=23 // pred_check
          %p598 = pneg %p117
        $region30: #{tpu_custom_call.1} parent=23 // pred_check_branch
          %600 = sbr.rel (%p598) target = $region32
        $region31: #{tpu_custom_call.1} parent=23 // pred_region
          %p601 = scmp.lt.s32.totalorder %s29, 1
          %s602 = scalar_select %p601, %s29, 1
          %s603 = smul.addr %s602, 3
          %s604 = smul.addr %s603, 4
          %s605 = scalar_lea.vmem %s3, %s604
        $region32: #{tpu_custom_call.1} parent=23 // pred_fallthru
          _
        // Predicated region
        $region33: #{tpu_custom_call.1} parent=23 // pred_check
          %p606 = pneg %p143
        $region34: #{tpu_custom_call.1} parent=23 // pred_check_branch
          %608 = sbr.rel (%p606) target = $region36
        $region35: #{tpu_custom_call.1} parent=23 // pred_region
          %p609 = scmp.lt.s32.totalorder %s29, 1
          %s610 = scalar_select %p609, %s29, 1
          %s611 = smul.addr %s610, 3
          %s612 = smul.addr %s611, 4
          %s613 = scalar_lea.vmem %s4, %s612
        $region36: #{tpu_custom_call.1} parent=23 // pred_fallthru
          _
        // Predicated region
        $region37: #{tpu_custom_call.1} parent=23 // pred_check
          %p614 = pneg %p169
        $region38: #{tpu_custom_call.1} parent=23 // pred_check_branch
          %616 = sbr.rel (%p614) target = $region40
        $region39: #{tpu_custom_call.1} parent=23 // pred_region
          %p617 = scmp.lt.s32.totalorder %s29, 1
          %s618 = scalar_select %p617, %s29, 1
          %s619 = smul.addr %s618, 3
          %s620 = smul.addr %s619, 4
          %s621 = scalar_lea.vmem %s5, %s620
        $region40: #{tpu_custom_call.1} parent=23 // pred_fallthru
          _
        // Predicated region
        $region41: #{tpu_custom_call.1} parent=23 // pred_check
          %p622 = pneg %p195
        $region42: #{tpu_custom_call.1} parent=23 // pred_check_branch
          %624 = sbr.rel (%p622) target = $region44
        $region43: #{tpu_custom_call.1} parent=23 // pred_region
          %p625 = scmp.lt.s32.totalorder %s29, 1
          %s626 = scalar_select %p625, %s29, 1
          %s627 = smul.addr %s626, 3
          %s628 = smul.addr %s627, 8
          %s629 = scalar_lea.vmem %s6, %s628
        $region44: #{tpu_custom_call.1} parent=23 // pred_fallthru
          _
        // Predicated region
        $region45: #{tpu_custom_call.1} parent=23 // pred_check
          %p630 = pneg %p221
        $region46: #{tpu_custom_call.1} parent=23 // pred_check_branch
          %632 = sbr.rel (%p630) target = $region48
        $region47: #{tpu_custom_call.1} parent=23 // pred_region
          %p633 = scmp.lt.s32.totalorder %s29, 1
          %s634 = scalar_select %p633, %s29, 1
          %s635 = smul.addr %s634, 8
          %s636 = scalar_lea.vmem %s7, %s635
        $region48: #{tpu_custom_call.1} parent=23 // pred_fallthru
          _
        // Predicated region
        $region49: #{tpu_custom_call.1} parent=23 // pred_check
          %p637 = pneg %p247
        $region50: #{tpu_custom_call.1} parent=23 // pred_check_branch
          %639 = sbr.rel (%p637) target = $region52
        $region51: #{tpu_custom_call.1} parent=23 // pred_region
          %p640 = scmp.lt.s32.totalorder %s29, 1
          %s641 = scalar_select %p640, %s29, 1
          %s642 = smul.addr %s641, 8
          %s643 = scalar_lea.vmem %s8, %s642
        $region52: #{tpu_custom_call.1} parent=23 // pred_fallthru
          _
        // Predicated region
        $region53: #{tpu_custom_call.1} parent=23 // pred_check
          %p644 = pneg %p273
        $region54: #{tpu_custom_call.1} parent=23 // pred_check_branch
          %646 = sbr.rel (%p644) target = $region56
        $region55: #{tpu_custom_call.1} parent=23 // pred_region
          %p647 = scmp.lt.s32.totalorder %s29, 1
          %s648 = scalar_select %p647, %s29, 1
          %s649 = scalar_lea.vmem %s9, %s648
        $region56: #{tpu_custom_call.1} parent=23 // pred_fallthru
          _
        // Predicated region
        $region57: #{tpu_custom_call.1} parent=23 // pred_check
          %p650 = pneg %p299
        $region58: #{tpu_custom_call.1} parent=23 // pred_check_branch
          %652 = sbr.rel (%p650) target = $region60
        $region59: #{tpu_custom_call.1} parent=23 // pred_region
          %p653 = scmp.lt.s32.totalorder %s29, 1
          %s654 = scalar_select %p653, %s29, 1
          %s655 = smul.addr %s654, 2
          %s656 = smul.addr %s655, 8
          %s657 = scalar_lea.vmem %s10, %s656
        $region60: #{tpu_custom_call.1} parent=23 // pred_fallthru
          _
        // Predicated region
        $region61: #{tpu_custom_call.1} parent=23 // pred_check
          %p658 = pneg %p325
        $region62: #{tpu_custom_call.1} parent=23 // pred_check_branch
          %660 = sbr.rel (%p658) target = $region64
        $region63: #{tpu_custom_call.1} parent=23 // pred_region
          %p661 = scmp.lt.s32.totalorder %s29, 1
          %s662 = scalar_select %p661, %s29, 1
          %s663 = scalar_lea.vmem %s11, %s662
        $region64: #{tpu_custom_call.1} parent=23 // pred_fallthru
          _
        // Predicated region
        $region65: #{tpu_custom_call.1} parent=23 // pred_check
          %p664 = pneg %p351
        $region66: #{tpu_custom_call.1} parent=23 // pred_check_branch
          %666 = sbr.rel (%p664) target = $region68
        $region67: #{tpu_custom_call.1} parent=23 // pred_region
          %p667 = scmp.lt.s32.totalorder %s29, 1
          %s668 = scalar_select %p667, %s29, 1
          %s669 = smul.addr %s668, 8
          %s670 = scalar_lea.vmem %s12, %s669
        $region68: #{tpu_custom_call.1} parent=23 // pred_fallthru
          _
        // Predicated region
        $region69: #{tpu_custom_call.1} parent=23 // pred_check
          %p671 = pneg %p377
        $region70: #{tpu_custom_call.1} parent=23 // pred_check_branch
          %673 = sbr.rel (%p671) target = $region72
        $region71: #{tpu_custom_call.1} parent=23 // pred_region
          %p674 = scmp.lt.s32.totalorder %s29, 1
          %s675 = scalar_select %p674, %s29, 1
          %s676 = scalar_lea.vmem %s13, %s675
        $region72: #{tpu_custom_call.1} parent=23 // pred_fallthru
          _
        // Predicated region
        $region73: #{tpu_custom_call.1} parent=23 // pred_check
          %p677 = pneg %p403
        $region74: #{tpu_custom_call.1} parent=23 // pred_check_branch
          %679 = sbr.rel (%p677) target = $region76
        $region75: #{tpu_custom_call.1} parent=23 // pred_region
          %p680 = scmp.lt.s32.totalorder %s29, 1
          %s681 = scalar_select %p680, %s29, 1
          %s682 = scalar_lea.vmem %s14, %s681
        $region76: #{tpu_custom_call.1} parent=23 // pred_fallthru
          _
        // Predicated region
        $region77: #{tpu_custom_call.1} parent=23 // pred_check
          %p683 = pneg %p429
        $region78: #{tpu_custom_call.1} parent=23 // pred_check_branch
          %685 = sbr.rel (%p683) target = $region80
        $region79: #{tpu_custom_call.1} parent=23 // pred_region
          %p686 = scmp.lt.s32.totalorder %s29, 1
          %s687 = scalar_select %p686, %s29, 1
          %s688 = smul.addr %s687, 8
          %s689 = scalar_lea.vmem %s15, %s688
        $region80: #{tpu_custom_call.1} parent=23 // pred_fallthru
          _
        // Predicated region
        $region81: #{tpu_custom_call.1} parent=23 // pred_check
          %p690 = pneg %p455
        $region82: #{tpu_custom_call.1} parent=23 // pred_check_branch
          %692 = sbr.rel (%p690) target = $region84
        $region83: #{tpu_custom_call.1} parent=23 // pred_region
          %p693 = scmp.lt.s32.totalorder %s29, 1
          %s694 = scalar_select %p693, %s29, 1
          %s695 = scalar_lea.vmem %s16, %s694
        $region84: #{tpu_custom_call.1} parent=23 // pred_fallthru
          _
        // Predicated region
        $region85: #{tpu_custom_call.1} parent=23 // pred_check
          %p696 = pneg %p481
        $region86: #{tpu_custom_call.1} parent=23 // pred_check_branch
          %698 = sbr.rel (%p696) target = $region88
        $region87: #{tpu_custom_call.1} parent=23 // pred_region
          %p699 = scmp.lt.s32.totalorder %s29, 1
          %s700 = scalar_select %p699, %s29, 1
          %s701 = scalar_lea.vmem %s17, %s700
        $region88: #{tpu_custom_call.1} parent=23 // pred_fallthru
          _
        // Predicated region
        $region89: #{tpu_custom_call.1} parent=23 // pred_check
          %p702 = pneg %p507
        $region90: #{tpu_custom_call.1} parent=23 // pred_check_branch
          %704 = sbr.rel (%p702) target = $region92
        $region91: #{tpu_custom_call.1} parent=23 // pred_region
          %p705 = scmp.lt.s32.totalorder %s29, 1
          %s706 = scalar_select %p705, %s29, 1
          %s707 = smul.addr %s706, 2
          %s708 = smul.addr %s707, 8
          %s709 = scalar_lea.vmem %s18, %s708
        $region92: #{tpu_custom_call.1} parent=23 // pred_fallthru
          _
        // Predicated region
        $region93: #{tpu_custom_call.1} parent=23 // pred_check
          %p710 = pneg %p533
        $region94: #{tpu_custom_call.1} parent=23 // pred_check_branch
          %712 = sbr.rel (%p710) target = $region96
        $region95: #{tpu_custom_call.1} parent=23 // pred_region
          %p713 = scmp.lt.s32.totalorder %s29, 1
          %s714 = scalar_select %p713, %s29, 1
          %s715 = scalar_lea.vmem %s19, %s714
        $region96: #{tpu_custom_call.1} parent=23 // pred_fallthru
          _
      $region24: #{tpu_custom_call.1} parent=5 // pred_fallthru
        _
      %p716 = scmp.le.s32.totalorder 1, %s29
      %p717 = scmp.lt.s32.totalorder %s29, 3
      %p718 = pnand %p716, %p717
      %p719 = pneg %p718
      // Predicated region
      $region97: #{tpu_custom_call.1} parent=5 // pred_check
        _
      $region98: #{tpu_custom_call.1} parent=5 // pred_check_branch
        %721 = sbr.rel (%p718) target = $region100
      $region99: #{tpu_custom_call.1} parent=5 // pred_region
        %s722 = ssub.s32 %s29, 1
        %p723 = pneg %p50
        %p724 = pneg %p47
        %p725 = pneg %p71
        %p726 = pneg %p68
        %p727 = scmp.lt.s32.totalorder %s34, 1
        %s728 = scalar_select %p727, %s34, 1
        %s729 = smul.addr %s728, 3
        %s730 = smul.addr %s729, 4
        %s731 = scalar_lea.vmem %s2, %s730
        %p732 = pneg %p97
        %p733 = pneg %p94
        %p734 = scmp.lt.s32.totalorder %s34, 1
        %s735 = scalar_select %p734, %s34, 1
        %s736 = smul.addr %s735, 3
        %s737 = smul.addr %s736, 4
        %s738 = scalar_lea.vmem %s3, %s737
        %p739 = pneg %p123
        %p740 = pneg %p120
        %p741 = scmp.lt.s32.totalorder %s34, 1
        %s742 = scalar_select %p741, %s34, 1
        %s743 = smul.addr %s742, 3
        %s744 = smul.addr %s743, 4
        %s745 = scalar_lea.vmem %s4, %s744
        %p746 = pneg %p149
        %p747 = pneg %p146
        %p748 = scmp.lt.s32.totalorder %s34, 1
        %s749 = scalar_select %p748, %s34, 1
        %s750 = smul.addr %s749, 3
        %s751 = smul.addr %s750, 4
        %s752 = scalar_lea.vmem %s5, %s751
        %p753 = pneg %p175
        %p754 = pneg %p172
        %p755 = scmp.lt.s32.totalorder %s34, 1
        %s756 = scalar_select %p755, %s34, 1
        %s757 = smul.addr %s756, 3
        %s758 = smul.addr %s757, 8
        %s759 = scalar_lea.vmem %s6, %s758
        %p760 = pneg %p201
        %p761 = pneg %p198
        %p762 = scmp.lt.s32.totalorder %s34, 1
        %s763 = scalar_select %p762, %s34, 1
        %s764 = smul.addr %s763, 8
        %s765 = scalar_lea.vmem %s7, %s764
        %p766 = pneg %p227
        %p767 = pneg %p224
        %p768 = scmp.lt.s32.totalorder %s34, 1
        %s769 = scalar_select %p768, %s34, 1
        %s770 = smul.addr %s769, 8
        %s771 = scalar_lea.vmem %s8, %s770
        %p772 = pneg %p253
        %p773 = pneg %p250
        %p774 = scmp.lt.s32.totalorder %s34, 1
        %s775 = scalar_select %p774, %s34, 1
        %s776 = scalar_lea.vmem %s9, %s775
        %p777 = pneg %p279
        %p778 = pneg %p276
        %p779 = scmp.lt.s32.totalorder %s34, 1
        %s780 = scalar_select %p779, %s34, 1
        %s781 = smul.addr %s780, 2
        %s782 = smul.addr %s781, 8
        %s783 = scalar_lea.vmem %s10, %s782
        %p784 = pneg %p305
        %p785 = pneg %p302
        %p786 = scmp.lt.s32.totalorder %s34, 1
        %s787 = scalar_select %p786, %s34, 1
        %s788 = scalar_lea.vmem %s11, %s787
        %p789 = pneg %p331
        %p790 = pneg %p328
        %p791 = scmp.lt.s32.totalorder %s34, 1
        %s792 = scalar_select %p791, %s34, 1
        %s793 = smul.addr %s792, 8
        %s794 = scalar_lea.vmem %s12, %s793
        %p795 = pneg %p357
        %p796 = pneg %p354
        %p797 = scmp.lt.s32.totalorder %s34, 1
        %s798 = scalar_select %p797, %s34, 1
        %s799 = scalar_lea.vmem %s13, %s798
        %p800 = pneg %p383
        %p801 = pneg %p380
        %p802 = scmp.lt.s32.totalorder %s34, 1
        %s803 = scalar_select %p802, %s34, 1
        %s804 = scalar_lea.vmem %s14, %s803
        %p805 = pneg %p409
        %p806 = pneg %p406
        %p807 = scmp.lt.s32.totalorder %s34, 1
        %s808 = scalar_select %p807, %s34, 1
        %s809 = smul.addr %s808, 8
        %s810 = scalar_lea.vmem %s15, %s809
        %p811 = pneg %p435
        %p812 = pneg %p432
        %p813 = scmp.lt.s32.totalorder %s34, 1
        %s814 = scalar_select %p813, %s34, 1
        %s815 = scalar_lea.vmem %s16, %s814
        %p816 = pneg %p461
        %p817 = pneg %p458
        %p818 = scmp.lt.s32.totalorder %s34, 1
        %s819 = scalar_select %p818, %s34, 1
        %s820 = scalar_lea.vmem %s17, %s819
        %p821 = pneg %p487
        %p822 = pneg %p484
        %p823 = scmp.lt.s32.totalorder %s34, 1
        %s824 = scalar_select %p823, %s34, 1
        %s825 = smul.addr %s824, 2
        %s826 = smul.addr %s825, 8
        %s827 = scalar_lea.vmem %s18, %s826
        %p828 = pneg %p513
        %p829 = pneg %p510
        %p830 = scmp.lt.s32.totalorder %s34, 1
        %s831 = scalar_select %p830, %s34, 1
        %s832 = scalar_lea.vmem %s19, %s831
        %p833 = pneg %p539
        %p834 = pneg %p536
        %p835 = pneg %p565
        %p836 = pneg %p562
        %s837 = sand.u32 %s552, 1
        %s838 = scalar_lea.sflag [#allocation3], %s837
        %s839 = sand.u32 %s552, 1
        %s840 = smul.addr %s839, 8
        %s841 = scalar_lea.vmem [#allocation2], %s840
        %p842 = scmp.lt.s32.totalorder %s34, 1
        %s843 = scalar_select %p842, %s34, 1
        %s844 = smul.addr %s843, 3
        %s845 = smul.addr %s844, 4
        %s846 = scalar_lea.vmem %s2, %s845
        %p847 = scmp.lt.s32.totalorder %s34, 1
        %s848 = scalar_select %p847, %s34, 1
        %s849 = smul.addr %s848, 3
        %s850 = smul.addr %s849, 4
        %s851 = scalar_lea.vmem %s3, %s850
        %p852 = scmp.lt.s32.totalorder %s34, 1
        %s853 = scalar_select %p852, %s34, 1
        %s854 = smul.addr %s853, 3
        %s855 = smul.addr %s854, 4
        %s856 = scalar_lea.vmem %s4, %s855
        %p857 = scmp.lt.s32.totalorder %s34, 1
        %s858 = scalar_select %p857, %s34, 1
        %s859 = smul.addr %s858, 3
        %s860 = smul.addr %s859, 4
        %s861 = scalar_lea.vmem %s5, %s860
        %p862 = scmp.lt.s32.totalorder %s34, 1
        %s863 = scalar_select %p862, %s34, 1
        %s864 = smul.addr %s863, 3
        %s865 = smul.addr %s864, 8
        %s866 = scalar_lea.vmem %s6, %s865
        %p867 = scmp.lt.s32.totalorder %s34, 1
        %s868 = scalar_select %p867, %s34, 1
        %s869 = smul.addr %s868, 8
        %s870 = scalar_lea.vmem %s7, %s869
        %p871 = scmp.lt.s32.totalorder %s34, 1
        %s872 = scalar_select %p871, %s34, 1
        %s873 = smul.addr %s872, 8
        %s874 = scalar_lea.vmem %s8, %s873
        %p875 = scmp.lt.s32.totalorder %s34, 1
        %s876 = scalar_select %p875, %s34, 1
        %s877 = scalar_lea.vmem %s9, %s876
        %p878 = scmp.lt.s32.totalorder %s34, 1
        %s879 = scalar_select %p878, %s34, 1
        %s880 = smul.addr %s879, 2
        %s881 = smul.addr %s880, 8
        %s882 = scalar_lea.vmem %s10, %s881
        %p883 = scmp.lt.s32.totalorder %s34, 1
        %s884 = scalar_select %p883, %s34, 1
        %s885 = scalar_lea.vmem %s11, %s884
        %p886 = scmp.lt.s32.totalorder %s34, 1
        %s887 = scalar_select %p886, %s34, 1
        %s888 = smul.addr %s887, 8
        %s889 = scalar_lea.vmem %s12, %s888
        %p890 = scmp.lt.s32.totalorder %s34, 1
        %s891 = scalar_select %p890, %s34, 1
        %s892 = scalar_lea.vmem %s13, %s891
        %p893 = scmp.lt.s32.totalorder %s34, 1
        %s894 = scalar_select %p893, %s34, 1
        %s895 = scalar_lea.vmem %s14, %s894
        %p896 = scmp.lt.s32.totalorder %s34, 1
        %s897 = scalar_select %p896, %s34, 1
        %s898 = smul.addr %s897, 8
        %s899 = scalar_lea.vmem %s15, %s898
        %p900 = scmp.lt.s32.totalorder %s34, 1
        %s901 = scalar_select %p900, %s34, 1
        %s902 = scalar_lea.vmem %s16, %s901
        %p903 = scmp.lt.s32.totalorder %s34, 1
        %s904 = scalar_select %p903, %s34, 1
        %s905 = scalar_lea.vmem %s17, %s904
        %p906 = scmp.lt.s32.totalorder %s34, 1
        %s907 = scalar_select %p906, %s34, 1
        %s908 = smul.addr %s907, 2
        %s909 = smul.addr %s908, 8
        %s910 = scalar_lea.vmem %s18, %s909
        %p911 = scmp.lt.s32.totalorder %s34, 1
        %s912 = scalar_select %p911, %s34, 1
        %s913 = scalar_lea.vmem %s19, %s912
        %v914 = vld [vmem:[%s0] sm:$0xff]
        %v915 = vld [vmem:[%s846] sm:$0xf]
        %v916 = vld [vmem:[%s846 + $0x4] sm:$0xf]
        %v917 = vld [vmem:[%s846 + $0x8] sm:$0xf]
        %v918 = vunpack.c.l.bf16 %v915
        %v919 = vunpack.c.l.bf16 %v916
        %v920 = vunpack.c.l.bf16 %v917
        %v921 = vld [vmem:[%s851] sm:$0xf]
        %v922 = vld [vmem:[%s851 + $0x4] sm:$0xf]
        %v923 = vld [vmem:[%s851 + $0x8] sm:$0xf]
        %v924 = vunpack.c.l.bf16 %v921
        %v925 = vunpack.c.l.bf16 %v922
        %v926 = vunpack.c.l.bf16 %v923
        %vm927 = vcmask 64512
        %v929 = vsel %vm927, %v924, 0
        %v932 = vsel %vm927, %v925, 0
        %v935 = vsel %vm927, %v926, 0
        %937 = vmatprep.subr.mxu0 0.0
        %938 = vmatpush1.msra.mxu0 0.0
        %939 = vmatprep.subr.mxu0 0.0
        %940 = vmatpush1.msra.mxu0 0.0
        %941 = vmatprep.subr.mxu0 0.0
        %942 = vmatpush1.msra.mxu0 0.0
        %943 = vmatprep.subr.mxu0 0.0
        %944 = vmatpush1.msra.mxu0 0.0
        %945 = vmatprep.subr.mxu0 0.0
        %946 = vmatpush1.msra.mxu0 0.0
        %947 = vmatprep.subr.mxu0 0.0
        %948 = vmatpush1.msra.mxu0 0.0
        %949 = vmatprep.subr.mxu0 0.0
        %950 = vmatpush1.msra.mxu0 0.0
        %951 = vmatprep.subr.mxu0 0.0
        %952 = vmatpush1.msra.mxu0 0.0
        %953 = vmatprep.subr.mxu0 0.0
        %954 = vmatpush1.msra.mxu0 0.0
        %955 = vmatprep.subr.mxu0 0.0
        %956 = vmatpush1.msra.mxu0 0.0
        %957 = vmatprep.subr.mxu0 0.0
        %958 = vmatpush1.msra.mxu0 0.0
        %959 = vmatprep.subr.mxu0 0.0
        %960 = vmatpush1.msra.mxu0 0.0
        %961 = vmatprep.subr.mxu0 0.0
        %962 = vmatpush1.msra.mxu0 0.0
        %963 = vmatprep.subr.mxu0 0.0
        %964 = vmatpush1.msra.mxu0 0.0
        %965 = vmatprep.subr.mxu0 0.0
        %966 = vmatpush1.msra.mxu0 0.0
        %967 = vmatprep.subr.mxu0 0.0
        %968 = vmatpush1.msra.mxu0 %v914
        %969 = vmatprep.subr.mxu0 0.0
        %970 = vmatpush2.msra.mxu0 0.0
        %971 = vmatprep.subr.mxu0 0.0
        %972 = vmatpush2.msra.mxu0 0.0
        %973 = vmatprep.subr.mxu0 0.0
        %974 = vmatpush2.msra.mxu0 0.0
        %975 = vmatprep.subr.mxu0 0.0
        %976 = vmatpush2.msra.mxu0 0.0
        %977 = vmatprep.subr.mxu0 0.0
        %978 = vmatpush2.msra.mxu0 0.0
        %979 = vmatprep.subr.mxu0 0.0
        %980 = vmatpush2.msra.mxu0 0.0
        %981 = vmatprep.subr.mxu0 0.0
        %982 = vmatpush2.msra.mxu0 0.0
        %983 = vmatprep.subr.mxu0 0.0
        %984 = vmatpush2.msra.mxu0 0.0
        %985 = vmatprep.subr.mxu0 0.0
        %986 = vmatpush2.msra.mxu0 0.0
        %987 = vmatprep.subr.mxu0 0.0
        %988 = vmatpush2.msra.mxu0 0.0
        %989 = vmatprep.subr.mxu0 0.0
        %990 = vmatpush2.msra.mxu0 0.0
        %991 = vmatprep.subr.mxu0 0.0
        %992 = vmatpush2.msra.mxu0 0.0
        %993 = vmatprep.subr.mxu0 0.0
        %994 = vmatpush2.msra.mxu0 0.0
        %995 = vmatprep.subr.mxu0 0.0
        %996 = vmatpush2.msra.mxu0 0.0
        %997 = vmatprep.subr.mxu0 0.0
        %998 = vmatpush2.msra.mxu0 0.0
        %999 = vmatprep.subr.mxu0 0.0
        %1000 = vmatpush2.msra.mxu0 0.0
        %1001 = vmatprep.mubr.f32.mxu0 0.0
        %1002 = vmatmul.mubr.f32.gmra.mxu0 %v929
        %v1003 = vpop.f32.mrf.mxu0
        %v1004 = vadd.f32 0.0, %v1003
        %v1005 = vpop.f32.mrf.mxu0
        %1006 = vmatprep.mubr.f32.mxu0 0.0
        %1007 = vmatmul.mubr.f32.gmra.mxu0 %v932
        %v1008 = vpop.f32.mrf.mxu0
        %v1009 = vadd.f32 0.0, %v1008
        %v1010 = vpop.f32.mrf.mxu0
        %1011 = vmatprep.mubr.f32.mxu0 0.0
        %1012 = vmatmul.mubr.f32.gmra.mxu0 %v935
        %v1013 = vpop.f32.mrf.mxu0
        %v1014 = vadd.f32 0.0, %v1013
        %v1015 = vpop.f32.mrf.mxu0
        %1016 = vdwg.mxu0
        %v1018 = vsel %vm927, %v918, 0
        %v1021 = vsel %vm927, %v919, 0
        %v1024 = vsel %vm927, %v920, 0
        %1026 = vmatprep.subr.mxu0 0.0
        %1027 = vmatpush1.msra.mxu0 0.0
        %1028 = vmatprep.subr.mxu0 0.0
        %1029 = vmatpush1.msra.mxu0 0.0
        %1030 = vmatprep.subr.mxu0 0.0
        %1031 = vmatpush1.msra.mxu0 0.0
        %1032 = vmatprep.subr.mxu0 0.0
        %1033 = vmatpush1.msra.mxu0 0.0
        %1034 = vmatprep.subr.mxu0 0.0
        %1035 = vmatpush1.msra.mxu0 0.0
        %1036 = vmatprep.subr.mxu0 0.0
        %1037 = vmatpush1.msra.mxu0 0.0
        %1038 = vmatprep.subr.mxu0 0.0
        %1039 = vmatpush1.msra.mxu0 0.0
        %1040 = vmatprep.subr.mxu0 0.0
        %1041 = vmatpush1.msra.mxu0 0.0
        %1042 = vmatprep.subr.mxu0 0.0
        %1043 = vmatpush1.msra.mxu0 0.0
        %1044 = vmatprep.subr.mxu0 0.0
        %1045 = vmatpush1.msra.mxu0 0.0
        %1046 = vmatprep.subr.mxu0 0.0
        %1047 = vmatpush1.msra.mxu0 0.0
        %1048 = vmatprep.subr.mxu0 0.0
        %1049 = vmatpush1.msra.mxu0 0.0
        %1050 = vmatprep.subr.mxu0 0.0
        %1051 = vmatpush1.msra.mxu0 0.0
        %1052 = vmatprep.subr.mxu0 0.0
        %1053 = vmatpush1.msra.mxu0 0.0
        %1054 = vmatprep.subr.mxu0 0.0
        %1055 = vmatpush1.msra.mxu0 0.0
        %1056 = vmatprep.subr.mxu0 0.0
        %1057 = vmatpush1.msra.mxu0 %v914
        %1058 = vmatprep.subr.mxu0 0.0
        %1059 = vmatpush2.msra.mxu0 0.0
        %1060 = vmatprep.subr.mxu0 0.0
        %1061 = vmatpush2.msra.mxu0 0.0
        %1062 = vmatprep.subr.mxu0 0.0
        %1063 = vmatpush2.msra.mxu0 0.0
        %1064 = vmatprep.subr.mxu0 0.0
        %1065 = vmatpush2.msra.mxu0 0.0
        %1066 = vmatprep.subr.mxu0 0.0
        %1067 = vmatpush2.msra.mxu0 0.0
        %1068 = vmatprep.subr.mxu0 0.0
        %1069 = vmatpush2.msra.mxu0 0.0
        %1070 = vmatprep.subr.mxu0 0.0
        %1071 = vmatpush2.msra.mxu0 0.0
        %1072 = vmatprep.subr.mxu0 0.0
        %1073 = vmatpush2.msra.mxu0 0.0
        %1074 = vmatprep.subr.mxu0 0.0
        %1075 = vmatpush2.msra.mxu0 0.0
        %1076 = vmatprep.subr.mxu0 0.0
        %1077 = vmatpush2.msra.mxu0 0.0
        %1078 = vmatprep.subr.mxu0 0.0
        %1079 = vmatpush2.msra.mxu0 0.0
        %1080 = vmatprep.subr.mxu0 0.0
        %1081 = vmatpush2.msra.mxu0 0.0
        %1082 = vmatprep.subr.mxu0 0.0
        %1083 = vmatpush2.msra.mxu0 0.0
        %1084 = vmatprep.subr.mxu0 0.0
        %1085 = vmatpush2.msra.mxu0 0.0
        %1086 = vmatprep.subr.mxu0 0.0
        %1087 = vmatpush2.msra.mxu0 0.0
        %1088 = vmatprep.subr.mxu0 0.0
        %1089 = vmatpush2.msra.mxu0 0.0
        %1090 = vmatprep.mubr.f32.mxu0 0.0
        %1091 = vmatmul.mubr.f32.gmra.mxu0 %v1018
        %v1092 = vpop.f32.mrf.mxu0
        %v1093 = vadd.f32 0.0, %v1092
        %v1094 = vpop.f32.mrf.mxu0
        %1095 = vmatprep.mubr.f32.mxu0 0.0
        %1096 = vmatmul.mubr.f32.gmra.mxu0 %v1021
        %v1097 = vpop.f32.mrf.mxu0
        %v1098 = vadd.f32 0.0, %v1097
        %v1099 = vpop.f32.mrf.mxu0
        %1100 = vmatprep.mubr.f32.mxu0 0.0
        %1101 = vmatmul.mubr.f32.gmra.mxu0 %v1024
        %v1102 = vpop.f32.mrf.mxu0
        %v1103 = vadd.f32 0.0, %v1102
        %v1104 = vpop.f32.mrf.mxu0
        %1105 = vdwg.mxu0
        %v1106 = vmul.f32 %v1004, %v1093
        %v1107 = vmul.f32 %v1009, %v1098
        %v1108 = vmul.f32 %v1014, %v1103
        %v1109 = vld [vmem:[%s874] sm:$0xff]
        %v1110 = vld [vmem:[%s877] sm:$0x1]
        %v1112 = vlaneseq
        %v1113 = vshrl.u32 %v1112, 7
        %v1114 = vsub.s32 0, %v1113
        %v1115 = vrot.slane %v1110, %v1114
        %v1118 = vsel %vm927, %v1106, 0
        %v1121 = vsel %vm927, %v1107, 0
        %v1124 = vsel %vm927, %v1108, 0
        %1126 = vmatprep.subr.mxu0 0.0
        %1127 = vmatpush1.msra.mxu0 0.0
        %1128 = vmatprep.subr.mxu0 0.0
        %1129 = vmatpush1.msra.mxu0 0.0
        %1130 = vmatprep.subr.mxu0 0.0
        %1131 = vmatpush1.msra.mxu0 0.0
        %1132 = vmatprep.subr.mxu0 0.0
        %1133 = vmatpush1.msra.mxu0 0.0
        %1134 = vmatprep.subr.mxu0 0.0
        %1135 = vmatpush1.msra.mxu0 0.0
        %1136 = vmatprep.subr.mxu0 0.0
        %1137 = vmatpush1.msra.mxu0 0.0
        %1138 = vmatprep.subr.mxu0 0.0
        %1139 = vmatpush1.msra.mxu0 0.0
        %1140 = vmatprep.subr.mxu0 0.0
        %1141 = vmatpush1.msra.mxu0 0.0
        %1142 = vmatprep.subr.mxu0 0.0
        %1143 = vmatpush1.msra.mxu0 0.0
        %1144 = vmatprep.subr.mxu0 0.0
        %1145 = vmatpush1.msra.mxu0 0.0
        %1146 = vmatprep.subr.mxu0 0.0
        %1147 = vmatpush1.msra.mxu0 0.0
        %1148 = vmatprep.subr.mxu0 0.0
        %1149 = vmatpush1.msra.mxu0 0.0
        %1150 = vmatprep.subr.mxu0 0.0
        %1151 = vmatpush1.msra.mxu0 0.0
        %1152 = vmatprep.subr.mxu0 0.0
        %1153 = vmatpush1.msra.mxu0 0.0
        %1154 = vmatprep.subr.mxu0 0.0
        %1155 = vmatpush1.msra.mxu0 0.0
        %1156 = vmatprep.subr.mxu0 0.0
        %1157 = vmatpush1.msra.mxu0 %v1109
        %1158 = vmatprep.subr.mxu0 0.0
        %1159 = vmatpush2.msra.mxu0 0.0
        %1160 = vmatprep.subr.mxu0 0.0
        %1161 = vmatpush2.msra.mxu0 0.0
        %1162 = vmatprep.subr.mxu0 0.0
        %1163 = vmatpush2.msra.mxu0 0.0
        %1164 = vmatprep.subr.mxu0 0.0
        %1165 = vmatpush2.msra.mxu0 0.0
        %1166 = vmatprep.subr.mxu0 0.0
        %1167 = vmatpush2.msra.mxu0 0.0
        %1168 = vmatprep.subr.mxu0 0.0
        %1169 = vmatpush2.msra.mxu0 0.0
        %1170 = vmatprep.subr.mxu0 0.0
        %1171 = vmatpush2.msra.mxu0 0.0
        %1172 = vmatprep.subr.mxu0 0.0
        %1173 = vmatpush2.msra.mxu0 0.0
        %1174 = vmatprep.subr.mxu0 0.0
        %1175 = vmatpush2.msra.mxu0 0.0
        %1176 = vmatprep.subr.mxu0 0.0
        %1177 = vmatpush2.msra.mxu0 0.0
        %1178 = vmatprep.subr.mxu0 0.0
        %1179 = vmatpush2.msra.mxu0 0.0
        %1180 = vmatprep.subr.mxu0 0.0
        %1181 = vmatpush2.msra.mxu0 0.0
        %1182 = vmatprep.subr.mxu0 0.0
        %1183 = vmatpush2.msra.mxu0 0.0
        %1184 = vmatprep.subr.mxu0 0.0
        %1185 = vmatpush2.msra.mxu0 0.0
        %1186 = vmatprep.subr.mxu0 0.0
        %1187 = vmatpush2.msra.mxu0 0.0
        %1188 = vmatprep.subr.mxu0 0.0
        %1189 = vmatpush2.msra.mxu0 0.0
        %1190 = vmatprep.mubr.f32.mxu0 0.0
        %1191 = vmatmul.mubr.f32.gmra.mxu0 %v1118
        %v1192 = vpop.f32.mrf.mxu0
        %v1193 = vadd.f32 %v1115, %v1192
        %v1194 = vpop.f32.mrf.mxu0
        %1195 = vmatprep.mubr.f32.mxu0 0.0
        %1196 = vmatmul.mubr.f32.gmra.mxu0 %v1121
        %v1197 = vpop.f32.mrf.mxu0
        %v1198 = vadd.f32 %v1115, %v1197
        %v1199 = vpop.f32.mrf.mxu0
        %1200 = vmatprep.mubr.f32.mxu0 0.0
        %1201 = vmatmul.mubr.f32.gmra.mxu0 %v1124
        %v1202 = vpop.f32.mrf.mxu0
        %v1203 = vadd.f32 %v1115, %v1202
        %v1204 = vpop.f32.mrf.mxu0
        %1205 = vdwg.mxu0
        %v1206 = vmax.f32 %v1193, 0.0
        %v1207 = vmax.f32 %v1198, 0.0
        %v1208 = vmax.f32 %v1203, 0.0
        %v1209 = vld [vmem:[%s882] sm:$0xff]
        %v1210 = vld [vmem:[%s882 + $0x8] sm:$0xff]
        %v1211 = vld [vmem:[%s885] sm:$0x1]
        %v1213 = vlaneseq
        %v1214 = vshrl.u32 %v1213, 7
        %v1215 = vsub.s32 0, %v1214
        %v1216 = vrot.slane %v1211, %v1215
        %vm1218 = vcmask 130048
        %v1220 = vsel %vm1218, %v1206, 0
        %v1223 = vsel %vm1218, %v1207, 0
        %v1226 = vsel %vm1218, %v1208, 0
        %1228 = vmatprep.subr.mxu0 0.0
        %1229 = vmatpush1.msra.mxu0 0.0
        %1230 = vmatprep.subr.mxu0 0.0
        %1231 = vmatpush1.msra.mxu0 0.0
        %1232 = vmatprep.subr.mxu0 0.0
        %1233 = vmatpush1.msra.mxu0 0.0
        %1234 = vmatprep.subr.mxu0 0.0
        %1235 = vmatpush1.msra.mxu0 0.0
        %1236 = vmatprep.subr.mxu0 0.0
        %1237 = vmatpush1.msra.mxu0 0.0
        %1238 = vmatprep.subr.mxu0 0.0
        %1239 = vmatpush1.msra.mxu0 0.0
        %1240 = vmatprep.subr.mxu0 0.0
        %1241 = vmatpush1.msra.mxu0 0.0
        %1242 = vmatprep.subr.mxu0 0.0
        %1243 = vmatpush1.msra.mxu0 0.0
        %1244 = vmatprep.subr.mxu0 0.0
        %1245 = vmatpush1.msra.mxu0 0.0
        %1246 = vmatprep.subr.mxu0 0.0
        %1247 = vmatpush1.msra.mxu0 0.0
        %1248 = vmatprep.subr.mxu0 0.0
        %1249 = vmatpush1.msra.mxu0 0.0
        %1250 = vmatprep.subr.mxu0 0.0
        %1251 = vmatpush1.msra.mxu0 0.0
        %1252 = vmatprep.subr.mxu0 0.0
        %1253 = vmatpush1.msra.mxu0 0.0
        %1254 = vmatprep.subr.mxu0 0.0
        %1255 = vmatpush1.msra.mxu0 0.0
        %1256 = vmatprep.subr.mxu0 0.0
        %1257 = vmatpush1.msra.mxu0 %v1210
        %1258 = vmatprep.subr.mxu0 0.0
        %1259 = vmatpush1.msra.mxu0 %v1209
        %1260 = vmatprep.subr.mxu0 0.0
        %1261 = vmatpush2.msra.mxu0 0.0
        %1262 = vmatprep.subr.mxu0 0.0
        %1263 = vmatpush2.msra.mxu0 0.0
        %1264 = vmatprep.subr.mxu0 0.0
        %1265 = vmatpush2.msra.mxu0 0.0
        %1266 = vmatprep.subr.mxu0 0.0
        %1267 = vmatpush2.msra.mxu0 0.0
        %1268 = vmatprep.subr.mxu0 0.0
        %1269 = vmatpush2.msra.mxu0 0.0
        %1270 = vmatprep.subr.mxu0 0.0
        %1271 = vmatpush2.msra.mxu0 0.0
        %1272 = vmatprep.subr.mxu0 0.0
        %1273 = vmatpush2.msra.mxu0 0.0
        %1274 = vmatprep.subr.mxu0 0.0
        %1275 = vmatpush2.msra.mxu0 0.0
        %1276 = vmatprep.subr.mxu0 0.0
        %1277 = vmatpush2.msra.mxu0 0.0
        %1278 = vmatprep.subr.mxu0 0.0
        %1279 = vmatpush2.msra.mxu0 0.0
        %1280 = vmatprep.subr.mxu0 0.0
        %1281 = vmatpush2.msra.mxu0 0.0
        %1282 = vmatprep.subr.mxu0 0.0
        %1283 = vmatpush2.msra.mxu0 0.0
        %1284 = vmatprep.subr.mxu0 0.0
        %1285 = vmatpush2.msra.mxu0 0.0
        %1286 = vmatprep.subr.mxu0 0.0
        %1287 = vmatpush2.msra.mxu0 0.0
        %1288 = vmatprep.subr.mxu0 0.0
        %1289 = vmatpush2.msra.mxu0 0.0
        %1290 = vmatprep.subr.mxu0 0.0
        %1291 = vmatpush2.msra.mxu0 0.0
        %1292 = vmatprep.mubr.f32.mxu0 0.0
        %1293 = vmatmul.mubr.f32.gmra.mxu0 %v1220
        %v1294 = vpop.f32.mrf.mxu0
        %v1295 = vadd.f32 %v1216, %v1294
        %v1296 = vpop.f32.mrf.mxu0
        %1297 = vmatprep.mubr.f32.mxu0 0.0
        %1298 = vmatmul.mubr.f32.gmra.mxu0 %v1223
        %v1299 = vpop.f32.mrf.mxu0
        %v1300 = vadd.f32 %v1216, %v1299
        %v1301 = vpop.f32.mrf.mxu0
        %1302 = vmatprep.mubr.f32.mxu0 0.0
        %1303 = vmatmul.mubr.f32.gmra.mxu0 %v1226
        %v1304 = vpop.f32.mrf.mxu0
        %v1305 = vadd.f32 %v1216, %v1304
        %v1306 = vpop.f32.mrf.mxu0
        %1307 = vdwg.mxu0
        %v1308 = vxor.u32 %v1295, 2147483648
        %v1309 = vxor.u32 %v1300, 2147483648
        %v1310 = vxor.u32 %v1305, 2147483648
        %v1311 = vmul.f32 %v1308, 1.442695
        %v1312 = vpow.pop %v1311
        %v1313 = vmul.f32 %v1309, 1.442695
        %v1314 = vpow.pop %v1313
        %v1315 = vmul.f32 %v1310, 1.442695
        %v1316 = vpow.pop %v1315
        %v1317 = vadd.f32 %v1312, 1.0
        %v1318 = vadd.f32 %v1314, 1.0
        %v1319 = vadd.f32 %v1316, 1.0
        %v1320 = vrcp.pop %v1317
        %v1321 = vmul.f32 1.0, %v1320
        %v1322 = vrcp.pop %v1318
        %v1323 = vmul.f32 1.0, %v1322
        %v1324 = vrcp.pop %v1319
        %v1325 = vmul.f32 1.0, %v1324
        %v1326 = vld [vmem:[%s889] sm:$0xff]
        %v1327 = vld [vmem:[%s892] sm:$0x1]
        %v1329 = vlaneseq
        %v1330 = vshrl.u32 %v1329, 7
        %v1331 = vsub.s32 0, %v1330
        %v1332 = vrot.slane %v1327, %v1331
        %1334 = vmatprep.subr.mxu0 0.0
        %1335 = vmatpush1.msra.mxu0 0.0
        %1336 = vmatprep.subr.mxu0 0.0
        %1337 = vmatpush1.msra.mxu0 0.0
        %1338 = vmatprep.subr.mxu0 0.0
        %1339 = vmatpush1.msra.mxu0 0.0
        %1340 = vmatprep.subr.mxu0 0.0
        %1341 = vmatpush1.msra.mxu0 0.0
        %1342 = vmatprep.subr.mxu0 0.0
        %1343 = vmatpush1.msra.mxu0 0.0
        %1344 = vmatprep.subr.mxu0 0.0
        %1345 = vmatpush1.msra.mxu0 0.0
        %1346 = vmatprep.subr.mxu0 0.0
        %1347 = vmatpush1.msra.mxu0 0.0
        %1348 = vmatprep.subr.mxu0 0.0
        %1349 = vmatpush1.msra.mxu0 0.0
        %1350 = vmatprep.subr.mxu0 0.0
        %1351 = vmatpush1.msra.mxu0 0.0
        %1352 = vmatprep.subr.mxu0 0.0
        %1353 = vmatpush1.msra.mxu0 0.0
        %1354 = vmatprep.subr.mxu0 0.0
        %1355 = vmatpush1.msra.mxu0 0.0
        %1356 = vmatprep.subr.mxu0 0.0
        %1357 = vmatpush1.msra.mxu0 0.0
        %1358 = vmatprep.subr.mxu0 0.0
        %1359 = vmatpush1.msra.mxu0 0.0
        %1360 = vmatprep.subr.mxu0 0.0
        %1361 = vmatpush1.msra.mxu0 0.0
        %1362 = vmatprep.subr.mxu0 0.0
        %1363 = vmatpush1.msra.mxu0 0.0
        %1364 = vmatprep.subr.mxu0 0.0
        %1365 = vmatpush1.msra.mxu0 %v1326
        %1366 = vmatprep.subr.mxu0 0.0
        %1367 = vmatpush2.msra.mxu0 0.0
        %1368 = vmatprep.subr.mxu0 0.0
        %1369 = vmatpush2.msra.mxu0 0.0
        %1370 = vmatprep.subr.mxu0 0.0
        %1371 = vmatpush2.msra.mxu0 0.0
        %1372 = vmatprep.subr.mxu0 0.0
        %1373 = vmatpush2.msra.mxu0 0.0
        %1374 = vmatprep.subr.mxu0 0.0
        %1375 = vmatpush2.msra.mxu0 0.0
        %1376 = vmatprep.subr.mxu0 0.0
        %1377 = vmatpush2.msra.mxu0 0.0
        %1378 = vmatprep.subr.mxu0 0.0
        %1379 = vmatpush2.msra.mxu0 0.0
        %1380 = vmatprep.subr.mxu0 0.0
        %1381 = vmatpush2.msra.mxu0 0.0
        %1382 = vmatprep.subr.mxu0 0.0
        %1383 = vmatpush2.msra.mxu0 0.0
        %1384 = vmatprep.subr.mxu0 0.0
        %1385 = vmatpush2.msra.mxu0 0.0
        %1386 = vmatprep.subr.mxu0 0.0
        %1387 = vmatpush2.msra.mxu0 0.0
        %1388 = vmatprep.subr.mxu0 0.0
        %1389 = vmatpush2.msra.mxu0 0.0
        %1390 = vmatprep.subr.mxu0 0.0
        %1391 = vmatpush2.msra.mxu0 0.0
        %1392 = vmatprep.subr.mxu0 0.0
        %1393 = vmatpush2.msra.mxu0 0.0
        %1394 = vmatprep.subr.mxu0 0.0
        %1395 = vmatpush2.msra.mxu0 0.0
        %1396 = vmatprep.subr.mxu0 0.0
        %1397 = vmatpush2.msra.mxu0 0.0
        %1398 = vmatprep.mubr.f32.mxu0 0.0
        %1399 = vmatmul.mubr.f32.gmra.mxu0 %v1118
        %v1400 = vpop.f32.mrf.mxu0
        %v1401 = vadd.f32 %v1332, %v1400
        %v1402 = vpop.f32.mrf.mxu0
        %1403 = vmatprep.mubr.f32.mxu0 0.0
        %1404 = vmatmul.mubr.f32.gmra.mxu0 %v1121
        %v1405 = vpop.f32.mrf.mxu0
        %v1406 = vadd.f32 %v1332, %v1405
        %v1407 = vpop.f32.mrf.mxu0
        %1408 = vmatprep.mubr.f32.mxu0 0.0
        %1409 = vmatmul.mubr.f32.gmra.mxu0 %v1124
        %v1410 = vpop.f32.mrf.mxu0
        %v1411 = vadd.f32 %v1332, %v1410
        %v1412 = vpop.f32.mrf.mxu0
        %1413 = vdwg.mxu0
        %v1414 = vmax.f32 %v1401, 0.0
        %v1415 = vmax.f32 %v1406, 0.0
        %v1416 = vmax.f32 %v1411, 0.0
        %v1417 = vld [vmem:[%s895] sm:$0x1]
        %v1419 = vlaneseq
        %v1420 = vshrl.u32 %v1419, 7
        %v1421 = vsub.s32 0, %v1420
        %v1422 = vrot.slane %v1417, %v1421
        %v1424 = vmul.f32 %v1422, %v1414
        %v1425 = vmul.f32 %v1422, %v1415
        %v1426 = vmul.f32 %v1422, %v1416
        %vm1427 = vcmp.ge.f32.partialorder %v1424, 0.0
        %vm1428 = vcmp.ge.f32.partialorder %v1425, 0.0
        %vm1429 = vcmp.ge.f32.partialorder %v1426, 0.0
        %v1430 = vmul.f32 %v1424, 0.01
        %v1431 = vmul.f32 %v1425, 0.01
        %v1432 = vmul.f32 %v1426, 0.01
        %v1433 = vsel %vm1427, %v1424, %v1430
        %v1434 = vsel %vm1428, %v1425, %v1431
        %v1435 = vsel %vm1429, %v1426, %v1432
        %v1436 = vld [vmem:[%s899] sm:$0xff]
        %v1437 = vld [vmem:[%s902] sm:$0x1]
        %v1439 = vlaneseq
        %v1440 = vshrl.u32 %v1439, 7
        %v1441 = vsub.s32 0, %v1440
        %v1442 = vrot.slane %v1437, %v1441
        %1444 = vmatprep.subr.mxu0 0.0
        %1445 = vmatpush1.msra.mxu0 0.0
        %1446 = vmatprep.subr.mxu0 0.0
        %1447 = vmatpush1.msra.mxu0 0.0
        %1448 = vmatprep.subr.mxu0 0.0
        %1449 = vmatpush1.msra.mxu0 0.0
        %1450 = vmatprep.subr.mxu0 0.0
        %1451 = vmatpush1.msra.mxu0 0.0
        %1452 = vmatprep.subr.mxu0 0.0
        %1453 = vmatpush1.msra.mxu0 0.0
        %1454 = vmatprep.subr.mxu0 0.0
        %1455 = vmatpush1.msra.mxu0 0.0
        %1456 = vmatprep.subr.mxu0 0.0
        %1457 = vmatpush1.msra.mxu0 0.0
        %1458 = vmatprep.subr.mxu0 0.0
        %1459 = vmatpush1.msra.mxu0 0.0
        %1460 = vmatprep.subr.mxu0 0.0
        %1461 = vmatpush1.msra.mxu0 0.0
        %1462 = vmatprep.subr.mxu0 0.0
        %1463 = vmatpush1.msra.mxu0 0.0
        %1464 = vmatprep.subr.mxu0 0.0
        %1465 = vmatpush1.msra.mxu0 0.0
        %1466 = vmatprep.subr.mxu0 0.0
        %1467 = vmatpush1.msra.mxu0 0.0
        %1468 = vmatprep.subr.mxu0 0.0
        %1469 = vmatpush1.msra.mxu0 0.0
        %1470 = vmatprep.subr.mxu0 0.0
        %1471 = vmatpush1.msra.mxu0 0.0
        %1472 = vmatprep.subr.mxu0 0.0
        %1473 = vmatpush1.msra.mxu0 0.0
        %1474 = vmatprep.subr.mxu0 0.0
        %1475 = vmatpush1.msra.mxu0 %v1436
        %1476 = vmatprep.subr.mxu0 0.0
        %1477 = vmatpush2.msra.mxu0 0.0
        %1478 = vmatprep.subr.mxu0 0.0
        %1479 = vmatpush2.msra.mxu0 0.0
        %1480 = vmatprep.subr.mxu0 0.0
        %1481 = vmatpush2.msra.mxu0 0.0
        %1482 = vmatprep.subr.mxu0 0.0
        %1483 = vmatpush2.msra.mxu0 0.0
        %1484 = vmatprep.subr.mxu0 0.0
        %1485 = vmatpush2.msra.mxu0 0.0
        %1486 = vmatprep.subr.mxu0 0.0
        %1487 = vmatpush2.msra.mxu0 0.0
        %1488 = vmatprep.subr.mxu0 0.0
        %1489 = vmatpush2.msra.mxu0 0.0
        %1490 = vmatprep.subr.mxu0 0.0
        %1491 = vmatpush2.msra.mxu0 0.0
        %1492 = vmatprep.subr.mxu0 0.0
        %1493 = vmatpush2.msra.mxu0 0.0
        %1494 = vmatprep.subr.mxu0 0.0
        %1495 = vmatpush2.msra.mxu0 0.0
        %1496 = vmatprep.subr.mxu0 0.0
        %1497 = vmatpush2.msra.mxu0 0.0
        %1498 = vmatprep.subr.mxu0 0.0
        %1499 = vmatpush2.msra.mxu0 0.0
        %1500 = vmatprep.subr.mxu0 0.0
        %1501 = vmatpush2.msra.mxu0 0.0
        %1502 = vmatprep.subr.mxu0 0.0
        %1503 = vmatpush2.msra.mxu0 0.0
        %1504 = vmatprep.subr.mxu0 0.0
        %1505 = vmatpush2.msra.mxu0 0.0
        %1506 = vmatprep.subr.mxu0 0.0
        %1507 = vmatpush2.msra.mxu0 0.0
        %1508 = vmatprep.mubr.f32.mxu0 0.0
        %1509 = vmatmul.mubr.f32.gmra.mxu0 %v1118
        %v1510 = vpop.f32.mrf.mxu0
        %v1511 = vadd.f32 %v1442, %v1510
        %v1512 = vpop.f32.mrf.mxu0
        %1513 = vmatprep.mubr.f32.mxu0 0.0
        %1514 = vmatmul.mubr.f32.gmra.mxu0 %v1121
        %v1515 = vpop.f32.mrf.mxu0
        %v1516 = vadd.f32 %v1442, %v1515
        %v1517 = vpop.f32.mrf.mxu0
        %1518 = vmatprep.mubr.f32.mxu0 0.0
        %1519 = vmatmul.mubr.f32.gmra.mxu0 %v1124
        %v1520 = vpop.f32.mrf.mxu0
        %v1521 = vadd.f32 %v1442, %v1520
        %v1522 = vpop.f32.mrf.mxu0
        %1523 = vdwg.mxu0
        %v1524 = vld [vmem:[%s856] sm:$0xf]
        %v1525 = vld [vmem:[%s856 + $0x4] sm:$0xf]
        %v1526 = vld [vmem:[%s856 + $0x8] sm:$0xf]
        %v1527 = vunpack.c.l.bf16 %v1524
        %v1528 = vunpack.c.l.bf16 %v1525
        %v1529 = vunpack.c.l.bf16 %v1526
        %v1530 = vld [vmem:[%s861] sm:$0xf]
        %v1531 = vld [vmem:[%s861 + $0x4] sm:$0xf]
        %v1532 = vld [vmem:[%s861 + $0x8] sm:$0xf]
        %v1533 = vunpack.c.l.bf16 %v1530
        %v1534 = vunpack.c.l.bf16 %v1531
        %v1535 = vunpack.c.l.bf16 %v1532
        %vm1536 = vcmask 7168
        %v1538 = vsel %vm1536, 1.0, 0
        %v1541 = vsel %vm1536, %v1321, 0
        %v1544 = vsel %vm1536, %v1323, 0
        %v1547 = vsel %vm1536, %v1325, 0
        %1549 = vmatprep.subr.mxu0 0.0
        %1550 = vmatpush1.xpose.msra.mxu0 0.0
        %1551 = vmatprep.subr.mxu0 0.0
        %1552 = vmatpush1.xpose.msra.mxu0 0.0
        %1553 = vmatprep.subr.mxu0 0.0
        %1554 = vmatpush1.xpose.msra.mxu0 0.0
        %1555 = vmatprep.subr.mxu0 0.0
        %1556 = vmatpush1.xpose.msra.mxu0 0.0
        %1557 = vmatprep.subr.mxu0 0.0
        %1558 = vmatpush1.xpose.msra.mxu0 0.0
        %1559 = vmatprep.subr.mxu0 0.0
        %1560 = vmatpush1.xpose.msra.mxu0 0.0
        %1561 = vmatprep.subr.mxu0 0.0
        %1562 = vmatpush1.xpose.msra.mxu0 0.0
        %1563 = vmatprep.subr.mxu0 0.0
        %1564 = vmatpush1.xpose.msra.mxu0 0.0
        %1565 = vmatprep.subr.mxu0 0.0
        %1566 = vmatpush1.xpose.msra.mxu0 0.0
        %1567 = vmatprep.subr.mxu0 0.0
        %1568 = vmatpush1.xpose.msra.mxu0 0.0
        %1569 = vmatprep.subr.mxu0 0.0
        %1570 = vmatpush1.xpose.msra.mxu0 0.0
        %1571 = vmatprep.subr.mxu0 0.0
        %1572 = vmatpush1.xpose.msra.mxu0 0.0
        %1573 = vmatprep.subr.mxu0 0.0
        %1574 = vmatpush1.xpose.msra.mxu0 0.0
        %1575 = vmatprep.subr.mxu0 0.0
        %1576 = vmatpush1.xpose.msra.mxu0 %v1547
        %1577 = vmatprep.subr.mxu0 0.0
        %1578 = vmatpush1.xpose.msra.mxu0 %v1544
        %1579 = vmatprep.subr.mxu0 0.0
        %1580 = vmatpush1.xpose.msra.mxu0 %v1541
        %1581 = vmatprep.subr.mxu0 0.0
        %1582 = vmatpush2.xpose.msra.mxu0 0.0
        %1583 = vmatprep.subr.mxu0 0.0
        %1584 = vmatpush2.xpose.msra.mxu0 0.0
        %1585 = vmatprep.subr.mxu0 0.0
        %1586 = vmatpush2.xpose.msra.mxu0 0.0
        %1587 = vmatprep.subr.mxu0 0.0
        %1588 = vmatpush2.xpose.msra.mxu0 0.0
        %1589 = vmatprep.subr.mxu0 0.0
        %1590 = vmatpush2.xpose.msra.mxu0 0.0
        %1591 = vmatprep.subr.mxu0 0.0
        %1592 = vmatpush2.xpose.msra.mxu0 0.0
        %1593 = vmatprep.subr.mxu0 0.0
        %1594 = vmatpush2.xpose.msra.mxu0 0.0
        %1595 = vmatprep.subr.mxu0 0.0
        %1596 = vmatpush2.xpose.msra.mxu0 0.0
        %1597 = vmatprep.subr.mxu0 0.0
        %1598 = vmatpush2.xpose.msra.mxu0 0.0
        %1599 = vmatprep.subr.mxu0 0.0
        %1600 = vmatpush2.xpose.msra.mxu0 0.0
        %1601 = vmatprep.subr.mxu0 0.0
        %1602 = vmatpush2.xpose.msra.mxu0 0.0
        %1603 = vmatprep.subr.mxu0 0.0
        %1604 = vmatpush2.xpose.msra.mxu0 0.0
        %1605 = vmatprep.subr.mxu0 0.0
        %1606 = vmatpush2.xpose.msra.mxu0 0.0
        %1607 = vmatprep.subr.mxu0 0.0
        %1608 = vmatpush2.xpose.msra.mxu0 0.0
        %1609 = vmatprep.subr.mxu0 0.0
        %1610 = vmatpush2.xpose.msra.mxu0 0.0
        %1611 = vmatprep.subr.mxu0 0.0
        %1612 = vmatpush2.xpose.msra.mxu0 0.0
        %1613 = vmatprep.mubr.f32.mxu0 0.0
        %1614 = vmatmul.mubr.f32.gmra.mxu0 %v1538
        %v1615 = vpop.f32.mrf.mxu0
        %v1616 = vadd.f32 0.0, %v1615
        %v1617 = vpop.f32.mrf.mxu0
        %1618 = vdwg.mxu0
        %v1619 = vlaneseq
        %v1620 = vshrl.u32 %v1619, 7
        %v1621 = vsub.s32 0, %v1620
        %v1622 = vrot.slane %v1616, %v1621
        %1623 = vset.pattern.permute.xlu0 0
        %1624 = vperm.xlu0 %1623, %v1321
        %v1625 = vpop.permute.xlu0 %1624
        %1627 = vset.pattern.permute.xlu0 0
        %1628 = vperm.xlu0 %1627, %v1323
        %v1629 = vpop.permute.xlu0 %1628
        %1631 = vset.pattern.permute.xlu0 0
        %1632 = vperm.xlu0 %1631, %v1325
        %v1633 = vpop.permute.xlu0 %1632
        %vm1635 = vcmp.gt.f32.partialorder %v1622, %v1625
        %vm1636 = vcmp.gt.f32.partialorder %v1622, %v1629
        %vm1637 = vcmp.gt.f32.partialorder %v1622, %v1633
        %v1638 = vsel %vm1635, 1, 0
        %v1639 = vsel %vm1636, 1, 0
        %v1640 = vsel %vm1637, 1, 0
        %v1641 = vcvt.s32.f32 %v1638
        %v1642 = vcvt.s32.f32 %v1639
        %v1643 = vcvt.s32.f32 %v1640
        %v1644 = vmul.f32 %v1527, %v1641
        %v1645 = vmul.f32 %v1528, %v1642
        %v1646 = vmul.f32 %v1529, %v1643
        %vm1647 = vcmp.eq.f32.partialorder %v1622, %v1625
        %vm1648 = vcmp.eq.f32.partialorder %v1622, %v1629
        %vm1649 = vcmp.eq.f32.partialorder %v1622, %v1633
        %v1650 = vsel %vm1647, 1, 0
        %v1651 = vsel %vm1648, 1, 0
        %v1652 = vsel %vm1649, 1, 0
        %v1653 = vcvt.s32.f32 %v1650
        %v1654 = vcvt.s32.f32 %v1651
        %v1655 = vcvt.s32.f32 %v1652
        %v1656 = vmul.f32 %v1533, %v1653
        %v1657 = vmul.f32 %v1534, %v1654
        %v1658 = vmul.f32 %v1535, %v1655
        %v1659 = vadd.f32 %v1644, %v1656
        %v1660 = vadd.f32 %v1645, %v1657
        %v1661 = vadd.f32 %v1646, %v1658
        %vm1662 = vcmask 195584
        %v1664 = vsel %vm1662, %v1659, 0
        %v1667 = vsel %vm1662, %v1660, 0
        %v1670 = vsel %vm1662, %v1661, 0
        %1672 = vmatprep.subr.mxu0 0.0
        %1673 = vmatpush1.msra.mxu0 0.0
        %1674 = vmatprep.subr.mxu0 0.0
        %1675 = vmatpush1.msra.mxu0 0.0
        %1676 = vmatprep.subr.mxu0 0.0
        %1677 = vmatpush1.msra.mxu0 0.0
        %1678 = vmatprep.subr.mxu0 0.0
        %1679 = vmatpush1.msra.mxu0 0.0
        %1680 = vmatprep.subr.mxu0 0.0
        %1681 = vmatpush1.msra.mxu0 0.0
        %1682 = vmatprep.subr.mxu0 0.0
        %1683 = vmatpush1.msra.mxu0 0.0
        %1684 = vmatprep.subr.mxu0 0.0
        %1685 = vmatpush1.msra.mxu0 0.0
        %1686 = vmatprep.subr.mxu0 0.0
        %1687 = vmatpush1.msra.mxu0 0.0
        %1688 = vmatprep.subr.mxu0 0.0
        %1689 = vmatpush1.msra.mxu0 0.0
        %1690 = vmatprep.subr.mxu0 0.0
        %1691 = vmatpush1.msra.mxu0 0.0
        %1692 = vmatprep.subr.mxu0 0.0
        %1693 = vmatpush1.msra.mxu0 0.0
        %1694 = vmatprep.subr.mxu0 0.0
        %1695 = vmatpush1.msra.mxu0 0.0
        %1696 = vmatprep.subr.mxu0 0.0
        %1697 = vmatpush1.msra.mxu0 0.0
        %1698 = vmatprep.subr.mxu0 0.0
        %1699 = vmatpush1.msra.mxu0 1.0
        %1700 = vmatprep.subr.mxu0 0.0
        %1701 = vmatpush1.msra.mxu0 1.0
        %1702 = vmatprep.subr.mxu0 0.0
        %1703 = vmatpush1.msra.mxu0 1.0
        %1704 = vmatprep.subr.mxu0 0.0
        %1705 = vmatpush2.msra.mxu0 0.0
        %1706 = vmatprep.subr.mxu0 0.0
        %1707 = vmatpush2.msra.mxu0 0.0
        %1708 = vmatprep.subr.mxu0 0.0
        %1709 = vmatpush2.msra.mxu0 0.0
        %1710 = vmatprep.subr.mxu0 0.0
        %1711 = vmatpush2.msra.mxu0 0.0
        %1712 = vmatprep.subr.mxu0 0.0
        %1713 = vmatpush2.msra.mxu0 0.0
        %1714 = vmatprep.subr.mxu0 0.0
        %1715 = vmatpush2.msra.mxu0 0.0
        %1716 = vmatprep.subr.mxu0 0.0
        %1717 = vmatpush2.msra.mxu0 0.0
        %1718 = vmatprep.subr.mxu0 0.0
        %1719 = vmatpush2.msra.mxu0 0.0
        %1720 = vmatprep.subr.mxu0 0.0
        %1721 = vmatpush2.msra.mxu0 0.0
        %1722 = vmatprep.subr.mxu0 0.0
        %1723 = vmatpush2.msra.mxu0 0.0
        %1724 = vmatprep.subr.mxu0 0.0
        %1725 = vmatpush2.msra.mxu0 0.0
        %1726 = vmatprep.subr.mxu0 0.0
        %1727 = vmatpush2.msra.mxu0 0.0
        %1728 = vmatprep.subr.mxu0 0.0
        %1729 = vmatpush2.msra.mxu0 0.0
        %1730 = vmatprep.subr.mxu0 0.0
        %1731 = vmatpush2.msra.mxu0 0.0
        %1732 = vmatprep.subr.mxu0 0.0
        %1733 = vmatpush2.msra.mxu0 0.0
        %1734 = vmatprep.subr.mxu0 0.0
        %1735 = vmatpush2.msra.mxu0 0.0
        %1736 = vmatprep.mubr.f32.mxu0 0.0
        %1737 = vmatmul.mubr.f32.gmra.mxu0 %v1664
        %v1738 = vpop.f32.mrf.mxu0
        %v1739 = vadd.f32 0.0, %v1738
        %v1740 = vpop.f32.mrf.mxu0
        %1741 = vmatprep.mubr.f32.mxu0 0.0
        %1742 = vmatmul.mubr.f32.gmra.mxu0 %v1667
        %v1743 = vpop.f32.mrf.mxu0
        %v1744 = vadd.f32 0.0, %v1743
        %v1745 = vpop.f32.mrf.mxu0
        %1746 = vmatprep.mubr.f32.mxu0 0.0
        %1747 = vmatmul.mubr.f32.gmra.mxu0 %v1670
        %v1748 = vpop.f32.mrf.mxu0
        %v1749 = vadd.f32 0.0, %v1748
        %v1750 = vpop.f32.mrf.mxu0
        %1751 = vdwg.mxu0
        %v1752 = vld [vmem:[%s866] sm:$0xff]
        %v1753 = vld [vmem:[%s866 + $0x8] sm:$0xff]
        %v1754 = vld [vmem:[%s866 + $0x10] sm:$0xff]
        %vm1755 = vcmp.lt.f32.partialorder %v1739, %v1752
        %vm1756 = vcmp.lt.f32.partialorder %v1744, %v1753
        %vm1757 = vcmp.lt.f32.partialorder %v1749, %v1754
        %v1758 = vsel %vm1755, 1, 0
        %v1759 = vsel %vm1756, 1, 0
        %v1760 = vsel %vm1757, 1, 0
        %v1761 = vcvt.s32.f32 %v1758
        %v1762 = vcvt.s32.f32 %v1759
        %v1763 = vcvt.s32.f32 %v1760
        %v1764 = vmul.f32 %v1321, %v1761
        %v1765 = vmul.f32 %v1323, %v1762
        %v1766 = vmul.f32 %v1325, %v1763
        %v1767 = vsel %vm1218, %v1433, -inf
        %v1768 = vsel %vm1218, %v1434, -inf
        %v1769 = vsel %vm1218, %v1435, -inf
        %v1770 = vmax.f32 %v1767, %v1768
        %v1771 = vmax.f32 %v1770, %v1769
        %v1772 = vrot.slane %v1771, 4
        %v1773 = vmax.f32 %v1771, %v1772
        %v1774 = vrot.slane %v1773, 2
        %v1775 = vmax.f32 %v1773, %v1774
        %v1776 = vrot.slane %v1775, 1
        %v1777 = vmax.f32 %v1775, %v1776
        %v1778 = vsub.f32 %v1433, %v1777
        %v1779 = vsub.f32 %v1434, %v1777
        %v1780 = vsub.f32 %v1435, %v1777
        %v1781 = vmul.f32 %v1778, 1.442695
        %v1782 = vpow.pop %v1781
        %v1783 = vmul.f32 %v1779, 1.442695
        %v1784 = vpow.pop %v1783
        %v1785 = vmul.f32 %v1780, 1.442695
        %v1786 = vpow.pop %v1785
        %1787 = vxpose.xlu0.b32.start [1/16] %v924, 128
        %1788 = vxpose.xlu0.b32.cont [2/16] %v925, 128
        %1789 = vxpose.xlu0.b32.cont [3/16] %v926, 128
        %1790 = vxpose.xlu0.b32.cont [4/16] 0.0, 128
        %1791 = vxpose.xlu0.b32.cont [5/16] 0.0, 128
        %1792 = vxpose.xlu0.b32.cont [6/16] 0.0, 128
        %1793 = vxpose.xlu0.b32.cont [7/16] 0.0, 128
        %1794 = vxpose.xlu0.b32.cont [8/16] 0.0, 128
        %1795 = vxpose.xlu0.b32.cont [9/16] 0.0, 128
        %1796 = vxpose.xlu0.b32.cont [10/16] 0.0, 128
        %1797 = vxpose.xlu0.b32.cont [11/16] 0.0, 128
        %1798 = vxpose.xlu0.b32.cont [12/16] 0.0, 128
        %1799 = vxpose.xlu0.b32.cont [13/16] 0.0, 128
        %1800 = vxpose.xlu0.b32.cont [14/16] 0.0, 128
        %1801 = vxpose.xlu0.b32.cont [15/16] 0.0, 128
        %1802 = vxpose.xlu0.b32.end [16/16] 0.0, 128
        %v1803 = vpop.trf.xlu0
        %v1804 = vpop.trf.xlu0
        %v1805 = vpop.trf.xlu0
        %v1806 = vpop.trf.xlu0
        %v1807 = vpop.trf.xlu0
        %v1808 = vpop.trf.xlu0
        %v1809 = vpop.trf.xlu0
        %v1810 = vpop.trf.xlu0
        %v1811 = vpop.trf.xlu0
        %v1812 = vpop.trf.xlu0
        %v1813 = vpop.trf.xlu0
        %v1814 = vpop.trf.xlu0
        %v1815 = vpop.trf.xlu0
        %v1816 = vpop.trf.xlu0
        %v1817 = vpop.trf.xlu0
        %v1818 = vpop.trf.xlu0
        %v1820 = vsel %vm1662, %v1803, 0
        %1822 = vmatprep.subr.mxu0 0.0
        %1823 = vmatpush1.msra.mxu0 0.0
        %1824 = vmatprep.subr.mxu0 0.0
        %1825 = vmatpush1.msra.mxu0 0.0
        %1826 = vmatprep.subr.mxu0 0.0
        %1827 = vmatpush1.msra.mxu0 0.0
        %1828 = vmatprep.subr.mxu0 0.0
        %1829 = vmatpush1.msra.mxu0 0.0
        %1830 = vmatprep.subr.mxu0 0.0
        %1831 = vmatpush1.msra.mxu0 0.0
        %1832 = vmatprep.subr.mxu0 0.0
        %1833 = vmatpush1.msra.mxu0 0.0
        %1834 = vmatprep.subr.mxu0 0.0
        %1835 = vmatpush1.msra.mxu0 0.0
        %1836 = vmatprep.subr.mxu0 0.0
        %1837 = vmatpush1.msra.mxu0 0.0
        %1838 = vmatprep.subr.mxu0 0.0
        %1839 = vmatpush1.msra.mxu0 0.0
        %1840 = vmatprep.subr.mxu0 0.0
        %1841 = vmatpush1.msra.mxu0 0.0
        %1842 = vmatprep.subr.mxu0 0.0
        %1843 = vmatpush1.msra.mxu0 0.0
        %1844 = vmatprep.subr.mxu0 0.0
        %1845 = vmatpush1.msra.mxu0 0.0
        %1846 = vmatprep.subr.mxu0 0.0
        %1847 = vmatpush1.msra.mxu0 0.0
        %1848 = vmatprep.subr.mxu0 0.0
        %1849 = vmatpush1.msra.mxu0 %v1786
        %1850 = vmatprep.subr.mxu0 0.0
        %1851 = vmatpush1.msra.mxu0 %v1784
        %1852 = vmatprep.subr.mxu0 0.0
        %1853 = vmatpush1.msra.mxu0 %v1782
        %1854 = vmatprep.subr.mxu0 0.0
        %1855 = vmatpush2.msra.mxu0 0.0
        %1856 = vmatprep.subr.mxu0 0.0
        %1857 = vmatpush2.msra.mxu0 0.0
        %1858 = vmatprep.subr.mxu0 0.0
        %1859 = vmatpush2.msra.mxu0 0.0
        %1860 = vmatprep.subr.mxu0 0.0
        %1861 = vmatpush2.msra.mxu0 0.0
        %1862 = vmatprep.subr.mxu0 0.0
        %1863 = vmatpush2.msra.mxu0 0.0
        %1864 = vmatprep.subr.mxu0 0.0
        %1865 = vmatpush2.msra.mxu0 0.0
        %1866 = vmatprep.subr.mxu0 0.0
        %1867 = vmatpush2.msra.mxu0 0.0
        %1868 = vmatprep.subr.mxu0 0.0
        %1869 = vmatpush2.msra.mxu0 0.0
        %1870 = vmatprep.subr.mxu0 0.0
        %1871 = vmatpush2.msra.mxu0 0.0
        %1872 = vmatprep.subr.mxu0 0.0
        %1873 = vmatpush2.msra.mxu0 0.0
        %1874 = vmatprep.subr.mxu0 0.0
        %1875 = vmatpush2.msra.mxu0 0.0
        %1876 = vmatprep.subr.mxu0 0.0
        %1877 = vmatpush2.msra.mxu0 0.0
        %1878 = vmatprep.subr.mxu0 0.0
        %1879 = vmatpush2.msra.mxu0 0.0
        %1880 = vmatprep.subr.mxu0 0.0
        %1881 = vmatpush2.msra.mxu0 0.0
        %1882 = vmatprep.subr.mxu0 0.0
        %1883 = vmatpush2.msra.mxu0 0.0
        %1884 = vmatprep.subr.mxu0 0.0
        %1885 = vmatpush2.msra.mxu0 0.0
        %1886 = vmatprep.mubr.f32.mxu0 0.0
        %1887 = vmatmul.mubr.f32.gmra.mxu0 %v1820
        %v1888 = vpop.f32.mrf.mxu0
        %v1889 = vadd.f32 0.0, %v1888
        %v1890 = vpop.f32.mrf.mxu0
        %1891 = vdwg.mxu0
        %1892 = vmatprep.subr.mxu0 0.0
        %1893 = vmatpush1.msra.mxu0 0.0
        %1894 = vmatprep.subr.mxu0 0.0
        %1895 = vmatpush1.msra.mxu0 0.0
        %1896 = vmatprep.subr.mxu0 0.0
        %1897 = vmatpush1.msra.mxu0 0.0
        %1898 = vmatprep.subr.mxu0 0.0
        %1899 = vmatpush1.msra.mxu0 0.0
        %1900 = vmatprep.subr.mxu0 0.0
        %1901 = vmatpush1.msra.mxu0 0.0
        %1902 = vmatprep.subr.mxu0 0.0
        %1903 = vmatpush1.msra.mxu0 0.0
        %1904 = vmatprep.subr.mxu0 0.0
        %1905 = vmatpush1.msra.mxu0 0.0
        %1906 = vmatprep.subr.mxu0 0.0
        %1907 = vmatpush1.msra.mxu0 0.0
        %1908 = vmatprep.subr.mxu0 0.0
        %1909 = vmatpush1.msra.mxu0 0.0
        %1910 = vmatprep.subr.mxu0 0.0
        %1911 = vmatpush1.msra.mxu0 0.0
        %1912 = vmatprep.subr.mxu0 0.0
        %1913 = vmatpush1.msra.mxu0 0.0
        %1914 = vmatprep.subr.mxu0 0.0
        %1915 = vmatpush1.msra.mxu0 0.0
        %1916 = vmatprep.subr.mxu0 0.0
        %1917 = vmatpush1.msra.mxu0 0.0
        %1918 = vmatprep.subr.mxu0 0.0
        %1919 = vmatpush1.msra.mxu0 0.0
        %1920 = vmatprep.subr.mxu0 0.0
        %1921 = vmatpush1.msra.mxu0 0.0
        %1922 = vmatprep.subr.mxu0 0.0
        %1923 = vmatpush1.msra.mxu0 %v1889
        %1924 = vmatprep.subr.mxu0 0.0
        %1925 = vmatpush2.msra.mxu0 0.0
        %1926 = vmatprep.subr.mxu0 0.0
        %1927 = vmatpush2.msra.mxu0 0.0
        %1928 = vmatprep.subr.mxu0 0.0
        %1929 = vmatpush2.msra.mxu0 0.0
        %1930 = vmatprep.subr.mxu0 0.0
        %1931 = vmatpush2.msra.mxu0 0.0
        %1932 = vmatprep.subr.mxu0 0.0
        %1933 = vmatpush2.msra.mxu0 0.0
        %1934 = vmatprep.subr.mxu0 0.0
        %1935 = vmatpush2.msra.mxu0 0.0
        %1936 = vmatprep.subr.mxu0 0.0
        %1937 = vmatpush2.msra.mxu0 0.0
        %1938 = vmatprep.subr.mxu0 0.0
        %1939 = vmatpush2.msra.mxu0 0.0
        %1940 = vmatprep.subr.mxu0 0.0
        %1941 = vmatpush2.msra.mxu0 0.0
        %1942 = vmatprep.subr.mxu0 0.0
        %1943 = vmatpush2.msra.mxu0 0.0
        %1944 = vmatprep.subr.mxu0 0.0
        %1945 = vmatpush2.msra.mxu0 0.0
        %1946 = vmatprep.subr.mxu0 0.0
        %1947 = vmatpush2.msra.mxu0 0.0
        %1948 = vmatprep.subr.mxu0 0.0
        %1949 = vmatpush2.msra.mxu0 0.0
        %1950 = vmatprep.subr.mxu0 0.0
        %1951 = vmatpush2.msra.mxu0 0.0
        %1952 = vmatprep.subr.mxu0 0.0
        %1953 = vmatpush2.msra.mxu0 0.0
        %1954 = vmatprep.subr.mxu0 0.0
        %1955 = vmatpush2.msra.mxu0 0.0
        %1956 = vmatprep.mubr.f32.mxu0 0.0
        %1957 = vmatmul.mubr.f32.gmra.mxu0 %v929
        %v1958 = vpop.f32.mrf.mxu0
        %v1959 = vadd.f32 1e-16, %v1958
        %v1960 = vpop.f32.mrf.mxu0
        %1961 = vmatprep.mubr.f32.mxu0 0.0
        %1962 = vmatmul.mubr.f32.gmra.mxu0 %v932
        %v1963 = vpop.f32.mrf.mxu0
        %v1964 = vadd.f32 1e-16, %v1963
        %v1965 = vpop.f32.mrf.mxu0
        %1966 = vmatprep.mubr.f32.mxu0 0.0
        %1967 = vmatmul.mubr.f32.gmra.mxu0 %v935
        %v1968 = vpop.f32.mrf.mxu0
        %v1969 = vadd.f32 1e-16, %v1968
        %v1970 = vpop.f32.mrf.mxu0
        %1971 = vdwg.mxu0
        %v1972 = vrcp.pop %v1959
        %v1973 = vmul.f32 %v1782, %v1972
        %v1974 = vrcp.pop %v1964
        %v1975 = vmul.f32 %v1784, %v1974
        %v1976 = vrcp.pop %v1969
        %v1977 = vmul.f32 %v1786, %v1976
        %v1978 = vld [vmem:[%s1] sm:$0xf]
        %v1979 = vld [vmem:[%s1 + $0x4] sm:$0xf]
        %v1980 = vunpack.c.l.bf16 %v1978
        %v1981 = vunpack.c.l.bf16 %v1979
        %v1983 = vsel %vm1218, %v1973, 0
        %v1986 = vsel %vm1218, %v1975, 0
        %v1989 = vsel %vm1218, %v1977, 0
        %1991 = vmatprep.subr.mxu0 0.0
        %1992 = vmatpush1.msra.mxu0 0.0
        %1993 = vmatprep.subr.mxu0 0.0
        %1994 = vmatpush1.msra.mxu0 0.0
        %1995 = vmatprep.subr.mxu0 0.0
        %1996 = vmatpush1.msra.mxu0 0.0
        %1997 = vmatprep.subr.mxu0 0.0
        %1998 = vmatpush1.msra.mxu0 0.0
        %1999 = vmatprep.subr.mxu0 0.0
        %2000 = vmatpush1.msra.mxu0 0.0
        %2001 = vmatprep.subr.mxu0 0.0
        %2002 = vmatpush1.msra.mxu0 0.0
        %2003 = vmatprep.subr.mxu0 0.0
        %2004 = vmatpush1.msra.mxu0 0.0
        %2005 = vmatprep.subr.mxu0 0.0
        %2006 = vmatpush1.msra.mxu0 0.0
        %2007 = vmatprep.subr.mxu0 0.0
        %2008 = vmatpush1.msra.mxu0 0.0
        %2009 = vmatprep.subr.mxu0 0.0
        %2010 = vmatpush1.msra.mxu0 0.0
        %2011 = vmatprep.subr.mxu0 0.0
        %2012 = vmatpush1.msra.mxu0 0.0
        %2013 = vmatprep.subr.mxu0 0.0
        %2014 = vmatpush1.msra.mxu0 0.0
        %2015 = vmatprep.subr.mxu0 0.0
        %2016 = vmatpush1.msra.mxu0 0.0
        %2017 = vmatprep.subr.mxu0 0.0
        %2018 = vmatpush1.msra.mxu0 0.0
        %2019 = vmatprep.subr.mxu0 0.0
        %2020 = vmatpush1.msra.mxu0 %v1981
        %2021 = vmatprep.subr.mxu0 0.0
        %2022 = vmatpush1.msra.mxu0 %v1980
        %2023 = vmatprep.subr.mxu0 0.0
        %2024 = vmatpush2.msra.mxu0 0.0
        %2025 = vmatprep.subr.mxu0 0.0
        %2026 = vmatpush2.msra.mxu0 0.0
        %2027 = vmatprep.subr.mxu0 0.0
        %2028 = vmatpush2.msra.mxu0 0.0
        %2029 = vmatprep.subr.mxu0 0.0
        %2030 = vmatpush2.msra.mxu0 0.0
        %2031 = vmatprep.subr.mxu0 0.0
        %2032 = vmatpush2.msra.mxu0 0.0
        %2033 = vmatprep.subr.mxu0 0.0
        %2034 = vmatpush2.msra.mxu0 0.0
        %2035 = vmatprep.subr.mxu0 0.0
        %2036 = vmatpush2.msra.mxu0 0.0
        %2037 = vmatprep.subr.mxu0 0.0
        %2038 = vmatpush2.msra.mxu0 0.0
        %2039 = vmatprep.subr.mxu0 0.0
        %2040 = vmatpush2.msra.mxu0 0.0
        %2041 = vmatprep.subr.mxu0 0.0
        %2042 = vmatpush2.msra.mxu0 0.0
        %2043 = vmatprep.subr.mxu0 0.0
        %2044 = vmatpush2.msra.mxu0 0.0
        %2045 = vmatprep.subr.mxu0 0.0
        %2046 = vmatpush2.msra.mxu0 0.0
        %2047 = vmatprep.subr.mxu0 0.0
        %2048 = vmatpush2.msra.mxu0 0.0
        %2049 = vmatprep.subr.mxu0 0.0
        %2050 = vmatpush2.msra.mxu0 0.0
        %2051 = vmatprep.subr.mxu0 0.0
        %2052 = vmatpush2.msra.mxu0 0.0
        %2053 = vmatprep.subr.mxu0 0.0
        %2054 = vmatpush2.msra.mxu0 0.0
        %2055 = vmatprep.mubr.f32.mxu0 0.0
        %2056 = vmatmul.mubr.f32.gmra.mxu0 %v1983
        %v2057 = vpop.f32.mrf.mxu0
        %v2058 = vadd.f32 0.0, %v2057
        %v2059 = vpop.f32.mrf.mxu0
        %2060 = vmatprep.mubr.f32.mxu0 0.0
        %2061 = vmatmul.mubr.f32.gmra.mxu0 %v1986
        %v2062 = vpop.f32.mrf.mxu0
        %v2063 = vadd.f32 0.0, %v2062
        %v2064 = vpop.f32.mrf.mxu0
        %2065 = vmatprep.mubr.f32.mxu0 0.0
        %2066 = vmatmul.mubr.f32.gmra.mxu0 %v1989
        %v2067 = vpop.f32.mrf.mxu0
        %v2068 = vadd.f32 0.0, %v2067
        %v2069 = vpop.f32.mrf.mxu0
        %2070 = vdwg.mxu0
        %v2071 = vmul.f32 %v1511, %v2058
        %v2072 = vmul.f32 %v1516, %v2063
        %v2073 = vmul.f32 %v1521, %v2068
        %2075 = vset.pattern.permute.xlu0 0
        %2076 = vperm.xlu0 %2075, %v1764
        %v2077 = vpop.permute.xlu0 %2076
        %2080 = vset.pattern.permute.xlu0 0
        %2081 = vperm.xlu0 %2080, %v1765
        %v2082 = vpop.permute.xlu0 %2081
        %2085 = vset.pattern.permute.xlu0 0
        %2086 = vperm.xlu0 %2085, %v1766
        %v2087 = vpop.permute.xlu0 %2086
        %v2089 = vmul.f32 %v2071, %v2077
        %v2090 = vmul.f32 %v2072, %v2082
        %v2091 = vmul.f32 %v2073, %v2087
        %v2092 = vxor.u32 %v2089, 2147483648
        %v2093 = vxor.u32 %v2090, 2147483648
        %v2094 = vxor.u32 %v2091, 2147483648
        %v2095 = vmul.f32 %v2092, 1.442695
        %v2096 = vpow.pop %v2095
        %v2097 = vmul.f32 %v2093, 1.442695
        %v2098 = vpow.pop %v2097
        %v2099 = vmul.f32 %v2094, 1.442695
        %v2100 = vpow.pop %v2099
        %v2101 = vadd.f32 %v2096, 1.0
        %v2102 = vadd.f32 %v2098, 1.0
        %v2103 = vadd.f32 %v2100, 1.0
        %v2104 = vrcp.pop %v2101
        %v2105 = vmul.f32 1.0, %v2104
        %v2106 = vrcp.pop %v2102
        %v2107 = vmul.f32 1.0, %v2106
        %v2108 = vrcp.pop %v2103
        %v2109 = vmul.f32 1.0, %v2108
        %2110 = vmatprep.subr.mxu0 0.0
        %2111 = vmatpush1.msra.mxu0 0.0
        %2112 = vmatprep.subr.mxu0 0.0
        %2113 = vmatpush1.msra.mxu0 0.0
        %2114 = vmatprep.subr.mxu0 0.0
        %2115 = vmatpush1.msra.mxu0 0.0
        %2116 = vmatprep.subr.mxu0 0.0
        %2117 = vmatpush1.msra.mxu0 0.0
        %2118 = vmatprep.subr.mxu0 0.0
        %2119 = vmatpush1.msra.mxu0 0.0
        %2120 = vmatprep.subr.mxu0 0.0
        %2121 = vmatpush1.msra.mxu0 0.0
        %2122 = vmatprep.subr.mxu0 0.0
        %2123 = vmatpush1.msra.mxu0 0.0
        %2124 = vmatprep.subr.mxu0 0.0
        %2125 = vmatpush1.msra.mxu0 0.0
        %2126 = vmatprep.subr.mxu0 0.0
        %2127 = vmatpush1.msra.mxu0 0.0
        %2128 = vmatprep.subr.mxu0 0.0
        %2129 = vmatpush1.msra.mxu0 0.0
        %2130 = vmatprep.subr.mxu0 0.0
        %2131 = vmatpush1.msra.mxu0 0.0
        %2132 = vmatprep.subr.mxu0 0.0
        %2133 = vmatpush1.msra.mxu0 0.0
        %2134 = vmatprep.subr.mxu0 0.0
        %2135 = vmatpush1.msra.mxu0 0.0
        %2136 = vmatprep.subr.mxu0 0.0
        %2137 = vmatpush1.msra.mxu0 %v2109
        %2138 = vmatprep.subr.mxu0 0.0
        %2139 = vmatpush1.msra.mxu0 %v2107
        %2140 = vmatprep.subr.mxu0 0.0
        %2141 = vmatpush1.msra.mxu0 %v2105
        %2142 = vmatprep.subr.mxu0 0.0
        %2143 = vmatpush2.msra.mxu0 0.0
        %2144 = vmatprep.subr.mxu0 0.0
        %2145 = vmatpush2.msra.mxu0 0.0
        %2146 = vmatprep.subr.mxu0 0.0
        %2147 = vmatpush2.msra.mxu0 0.0
        %2148 = vmatprep.subr.mxu0 0.0
        %2149 = vmatpush2.msra.mxu0 0.0
        %2150 = vmatprep.subr.mxu0 0.0
        %2151 = vmatpush2.msra.mxu0 0.0
        %2152 = vmatprep.subr.mxu0 0.0
        %2153 = vmatpush2.msra.mxu0 0.0
        %2154 = vmatprep.subr.mxu0 0.0
        %2155 = vmatpush2.msra.mxu0 0.0
        %2156 = vmatprep.subr.mxu0 0.0
        %2157 = vmatpush2.msra.mxu0 0.0
        %2158 = vmatprep.subr.mxu0 0.0
        %2159 = vmatpush2.msra.mxu0 0.0
        %2160 = vmatprep.subr.mxu0 0.0
        %2161 = vmatpush2.msra.mxu0 0.0
        %2162 = vmatprep.subr.mxu0 0.0
        %2163 = vmatpush2.msra.mxu0 0.0
        %2164 = vmatprep.subr.mxu0 0.0
        %2165 = vmatpush2.msra.mxu0 0.0
        %2166 = vmatprep.subr.mxu0 0.0
        %2167 = vmatpush2.msra.mxu0 0.0
        %2168 = vmatprep.subr.mxu0 0.0
        %2169 = vmatpush2.msra.mxu0 0.0
        %2170 = vmatprep.subr.mxu0 0.0
        %2171 = vmatpush2.msra.mxu0 0.0
        %2172 = vmatprep.subr.mxu0 0.0
        %2173 = vmatpush2.msra.mxu0 0.0
        %2174 = vmatprep.mubr.f32.mxu0 0.0
        %2175 = vmatmul.mubr.f32.gmra.mxu0 %v1820
        %v2176 = vpop.f32.mrf.mxu0
        %v2177 = vadd.f32 0.0, %v2176
        %v2178 = vpop.f32.mrf.mxu0
        %2179 = vdwg.mxu0
        %v2180 = vld [vmem:[%s870] sm:$0xff]
        %2182 = vset.pattern.permute.xlu0 0
        %2183 = vperm.xlu0 %2182, %v2180
        %v2184 = vpop.permute.xlu0 %2183
        %v2186 = vmul.f32 %v2177, %v2184
        %v2187 = vld [vmem:[%s905] sm:$0x1]
        %v2189 = vlaneseq
        %v2190 = vshrl.u32 %v2189, 7
        %v2191 = vsub.s32 0, %v2190
        %v2192 = vrot.slane %v2187, %v2191
        %v2194 = vadd.f32 %v2186, %v2192
        %v2195 = vld [vmem:[%s910] sm:$0xff]
        %v2196 = vld [vmem:[%s910 + $0x8] sm:$0xff]
        %v2197 = vld [vmem:[%s913] sm:$0x1]
        %v2199 = vlaneseq
        %v2200 = vshrl.u32 %v2199, 7
        %v2201 = vsub.s32 0, %v2200
        %v2202 = vrot.slane %v2197, %v2201
        %v2205 = vsel %vm1218, %v2194, 0
        %2207 = vmatprep.subr.mxu0 0.0
        %2208 = vmatpush1.msra.mxu0 0.0
        %2209 = vmatprep.subr.mxu0 0.0
        %2210 = vmatpush1.msra.mxu0 0.0
        %2211 = vmatprep.subr.mxu0 0.0
        %2212 = vmatpush1.msra.mxu0 0.0
        %2213 = vmatprep.subr.mxu0 0.0
        %2214 = vmatpush1.msra.mxu0 0.0
        %2215 = vmatprep.subr.mxu0 0.0
        %2216 = vmatpush1.msra.mxu0 0.0
        %2217 = vmatprep.subr.mxu0 0.0
        %2218 = vmatpush1.msra.mxu0 0.0
        %2219 = vmatprep.subr.mxu0 0.0
        %2220 = vmatpush1.msra.mxu0 0.0
        %2221 = vmatprep.subr.mxu0 0.0
        %2222 = vmatpush1.msra.mxu0 0.0
        %2223 = vmatprep.subr.mxu0 0.0
        %2224 = vmatpush1.msra.mxu0 0.0
        %2225 = vmatprep.subr.mxu0 0.0
        %2226 = vmatpush1.msra.mxu0 0.0
        %2227 = vmatprep.subr.mxu0 0.0
        %2228 = vmatpush1.msra.mxu0 0.0
        %2229 = vmatprep.subr.mxu0 0.0
        %2230 = vmatpush1.msra.mxu0 0.0
        %2231 = vmatprep.subr.mxu0 0.0
        %2232 = vmatpush1.msra.mxu0 0.0
        %2233 = vmatprep.subr.mxu0 0.0
        %2234 = vmatpush1.msra.mxu0 0.0
        %2235 = vmatprep.subr.mxu0 0.0
        %2236 = vmatpush1.msra.mxu0 %v2196
        %2237 = vmatprep.subr.mxu0 0.0
        %2238 = vmatpush1.msra.mxu0 %v2195
        %2239 = vmatprep.subr.mxu0 0.0
        %2240 = vmatpush2.msra.mxu0 0.0
        %2241 = vmatprep.subr.mxu0 0.0
        %2242 = vmatpush2.msra.mxu0 0.0
        %2243 = vmatprep.subr.mxu0 0.0
        %2244 = vmatpush2.msra.mxu0 0.0
        %2245 = vmatprep.subr.mxu0 0.0
        %2246 = vmatpush2.msra.mxu0 0.0
        %2247 = vmatprep.subr.mxu0 0.0
        %2248 = vmatpush2.msra.mxu0 0.0
        %2249 = vmatprep.subr.mxu0 0.0
        %2250 = vmatpush2.msra.mxu0 0.0
        %2251 = vmatprep.subr.mxu0 0.0
        %2252 = vmatpush2.msra.mxu0 0.0
        %2253 = vmatprep.subr.mxu0 0.0
        %2254 = vmatpush2.msra.mxu0 0.0
        %2255 = vmatprep.subr.mxu0 0.0
        %2256 = vmatpush2.msra.mxu0 0.0
        %2257 = vmatprep.subr.mxu0 0.0
        %2258 = vmatpush2.msra.mxu0 0.0
        %2259 = vmatprep.subr.mxu0 0.0
        %2260 = vmatpush2.msra.mxu0 0.0
        %2261 = vmatprep.subr.mxu0 0.0
        %2262 = vmatpush2.msra.mxu0 0.0
        %2263 = vmatprep.subr.mxu0 0.0
        %2264 = vmatpush2.msra.mxu0 0.0
        %2265 = vmatprep.subr.mxu0 0.0
        %2266 = vmatpush2.msra.mxu0 0.0
        %2267 = vmatprep.subr.mxu0 0.0
        %2268 = vmatpush2.msra.mxu0 0.0
        %2269 = vmatprep.subr.mxu0 0.0
        %2270 = vmatpush2.msra.mxu0 0.0
        %2271 = vmatprep.mubr.f32.mxu0 0.0
        %2272 = vmatmul.mubr.f32.gmra.mxu0 %v2205
        %v2273 = vpop.f32.mrf.mxu0
        %v2274 = vadd.f32 %v2202, %v2273
        %v2275 = vpop.f32.mrf.mxu0
        %2276 = vdwg.mxu0
        %2277 = vst.msk [vmem:[%s841] sm:$0xff] %vm927, %v2274
        %s2278 = sand.u32 %s552, 1
        %s2279 = scalar_lea.sflag [#allocation3], %s2278
        %s2280 = sand.u32 %s552, 1
        %s2281 = smul.addr %s2280, 8
        %s2282 = scalar_lea.vmem [#allocation2], %s2281
        // Predicated region
        $region101: #{tpu_custom_call.1} parent=99 // pred_check
          %p2283 = pneg %p562
        $region102: #{tpu_custom_call.1} parent=99 // pred_check_branch
          %2285 = sbr.rel (%p2283) target = $region104
        $region103: #{tpu_custom_call.1} parent=99 // pred_region
          %s2287 = ssub.s32 128, 128
          %2288 = vsyncadd %s2279, %s2287
          %s2289 = smul.addr %s34, 128
          %s2290 = scalar_lea.hbm %s20, %s2289
          %s2292 = sshll.u32 %s2282, 4
          %s2293 = int_to_ptr.vmem [resolvable:$true] %s2292
          %2295 = dma.vmem_to_hbm [thread:$0]  %s2293, 128, %s2290, %s2279
        $region104: #{tpu_custom_call.1} parent=99 // pred_fallthru
          _
      $region100: #{tpu_custom_call.1} parent=5 // pred_fallthru
        _
      %p2296 = scmp.le.s32.totalorder 2, %s29
      // Predicated region
      $region105: #{tpu_custom_call.1} parent=5 // pred_check
        %p2297 = pneg %p2296
      $region106: #{tpu_custom_call.1} parent=5 // pred_check_branch
        %2299 = sbr.rel (%p2297) target = $region108
      $region107: #{tpu_custom_call.1} parent=5 // pred_region
        %s2300 = ssub.s32 %s29, 2
        // Predicated region
        $region109: #{tpu_custom_call.1} parent=107 // pred_check
          %p2301 = pneg %p568
        $region110: #{tpu_custom_call.1} parent=107 // pred_check_branch
          %2303 = sbr.rel (%p2301) target = $region112
        $region111: #{tpu_custom_call.1} parent=107 // pred_region
          %s2304 = sand.u32 %s553, 1
          %s2305 = scalar_lea.sflag [#allocation3], %s2304
          %s2306 = sand.u32 %s553, 1
          %s2307 = smul.addr %s2306, 8
          %s2308 = scalar_lea.vmem [#allocation2], %s2307
          %2309 = dma.done %s2305, 128
        $region112: #{tpu_custom_call.1} parent=107 // pred_fallthru
          _
      $region108: #{tpu_custom_call.1} parent=5 // pred_fallthru
        _
    $region6: #{tpu_custom_call.1} parent=1 // loop_footer
      %s33 = sadd.s32 1, %s29
    $region7: #{tpu_custom_call.1} parent=1 // loop_footer_branch
      %28 = sbr.rel target = $region3
    $region8: #{tpu_custom_call.1} parent=1 // loop_exit
      _
    %2310 = vsyncpa [#allocation3], 1
    %s2311 = scalar_lea.sflag [#allocation3], 1
    %2312 = vsyncpa %s2311, 1

</llo_original>
